<compile_context>
chip_gen: v7x
topology: tpu7x:2x2x1
jax: 0.10.0
libtpu: 0.0.40
codegen_flags: <defaults>
</compile_context>

<pallas_src>
import jax
import jax.numpy as jnp
from jax.experimental import pallas as pl
from jax.experimental.pallas import tpu as pltpu


def _ffn_kernel(x_ref, w1_ref, b1_ref, w2_ref, b2_ref, o_ref, acc_ref):
    # x_ref:  (tm, C)   row tile (resident across the hidden grid axis)
    # w1_ref: (C, th)   slice of first-layer weight along the hidden dim
    # b1_ref: (1, th)
    # w2_ref: (th, C)   slice of second-layer weight along the hidden dim
    # b2_ref: (1, C)
    # o_ref:  (tm, C)
    # acc_ref:(tm, C)   f32 accumulator, resident across the hidden grid axis
    j = pl.program_id(1)

    @pl.when(j == 0)
    def _():
        acc_ref[...] = jnp.zeros_like(acc_ref)

    x = x_ref[...]
    # First matmul in the input dtype; accumulate in f32 on the MXU.
    h = jnp.dot(x, w1_ref[...], preferred_element_type=jnp.float32)
    h = h + b1_ref[...].astype(jnp.float32)
    h = jnp.maximum(h, 0.0)
    # Second matmul: feed the hidden activation back in the input dtype so the
    # MXU runs at native (e.g. bf16) throughput; accumulate in f32.
    acc_ref[...] += jnp.dot(h.astype(x.dtype), w2_ref[...],
                            preferred_element_type=jnp.float32)

    @pl.when(j == pl.num_programs(1) - 1)
    def _():
        o_ref[...] = (acc_ref[...]
                      + b2_ref[...].astype(jnp.float32)).astype(o_ref.dtype)


def _round_up(x, m):
    return ((x + m - 1) // m) * m


def _pick_row_tile(M, C, itemsize, target=256, vmem_budget=6 << 20):
    """Row tile: multiple of 8 sublanes, capped by a VMEM budget covering the
    double-buffered x tile, double-buffered out tile and the f32 accumulator."""
    cap = vmem_budget // max(C * (4 * itemsize + 4), 1)
    cap = max(8, (min(cap, target) // 8) * 8)
    return min(cap, _round_up(M, 8))


def _pick_hidden_tile(H, C, itemsize, target=512, vmem_budget=6 << 20):
    """Largest 128-multiple divisor of H that is <= target and keeps the
    double-buffered (C, th)/(th, C) weight slices within a VMEM budget.
    Falls back to the full H when H has no 128-aligned divisor (e.g. 4*300)."""
    if H % 128 != 0:
        return H
    cap = vmem_budget // max(4 * C * itemsize, 1)     # 2 weights x 2 buffers
    cap = max(128, (min(cap, target) // 128) * 128)
    t = min(H, cap)
    while H % t != 0:
        t -= 128
    return t


def feedforward_forward(x, w1, b1, w2, b2):
    """x: (B, T, C); w1: (C, 4C); b1: (4C,); w2: (4C, C); b2: (C,).
    Returns (B, T, C) = relu(x @ w1 + b1) @ w2 + b2 (dropout = identity)."""
    B, T, C = x.shape
    H = w1.shape[1]
    M = B * T
    itemsize = jnp.dtype(x.dtype).itemsize

    x2d = x.reshape(M, C)
    b1_2d = b1.reshape(1, H)
    b2_2d = b2.reshape(1, C)

    # Row tile (multiple of 8). Pad rows with zeros so the tile always divides.
    tm = _pick_row_tile(M, C, itemsize)
    Mp = _round_up(M, tm)
    if Mp != M:
        x2d = jnp.pad(x2d, ((0, Mp - M), (0, 0)))

    # Hidden (reduction) tile: multiple of 128 lanes dividing H, or full H.
    th = _pick_hidden_tile(H, C, itemsize)

    out2d = pl.pallas_call(
        _ffn_kernel,
        out_shape=jax.ShapeDtypeStruct((Mp, C), x.dtype),
        grid_spec=pltpu.PrefetchScalarGridSpec(
            num_scalar_prefetch=0,
            grid=(Mp // tm, H // th),
            in_specs=[
                pl.BlockSpec((tm, C), lambda i, j: (i, 0)),   # x rows
                pl.BlockSpec((C, th), lambda i, j: (0, j)),   # W1 slice
                pl.BlockSpec((1, th), lambda i, j: (0, j)),   # b1 slice
                pl.BlockSpec((th, C), lambda i, j: (j, 0)),   # W2 slice
                pl.BlockSpec((1, C), lambda i, j: (0, 0)),    # b2
            ],
            out_specs=pl.BlockSpec((tm, C), lambda i, j: (i, 0)),
            scratch_shapes=[pltpu.VMEM((tm, C), jnp.float32)],
        ),
        compiler_params=pltpu.CompilerParams(
            dimension_semantics=("parallel", "arbitrary")),
    )(x2d, w1, b1_2d, w2, b2_2d)

    if Mp != M:
        out2d = out2d[:M]
    return out2d.reshape(B, T, C)


def feedforward_reference(x, w1, b1, w2, b2):
    """Pure-JAX reference identical to the PyTorch forward (eval mode)."""
    h = jnp.maximum(x @ w1 + b1, 0.0)
    return h @ w2 + b2


if __name__ == "__main__":
    # Shapes the module implies: (B, T, n_embd) with n_embd = 300, hidden = 4*n_embd.
    B, T, C = 2, 8, 300
    H = 4 * C

    key = jax.random.PRNGKey(0)
    kx, kw1, kb1, kw2, kb2 = jax.random.split(key, 5)

    x = jax.random.normal(kx, (B, T, C), dtype=jnp.float32)
    # nn.Linear(C, H) weight is (H, C); store transposed (C, H). Bias bounds
    # mirror torch's default init range 1/sqrt(fan_in).
    bound1 = 1.0 / (C ** 0.5)
    bound2 = 1.0 / (H ** 0.5)
    w1 = jax.random.uniform(kw1, (C, H), jnp.float32, -bound1, bound1)
    b1 = jax.random.uniform(kb1, (H,), jnp.float32, -bound1, bound1)
    w2 = jax.random.uniform(kw2, (H, C), jnp.float32, -bound2, bound2)
    b2 = jax.random.uniform(kb2, (C,), jnp.float32, -bound2, bound2)

    out = feedforward_forward(x, w1, b1, w2, b2)
    out = jax.block_until_ready(out)

    ref = feedforward_reference(x, w1, b1, w2, b2)
    assert out.shape == (B, T, C)
    assert jnp.allclose(out, ref, atol=1e-4, rtol=1e-4), (
        float(jnp.max(jnp.abs(out - ref))))

    print("KERNEL_OK")
</pallas_src>

<mosaic_0001>
module attributes {stable_mosaic.version = 11 : i64} {
  func.func @_ffn_kernel(%arg0: i32, %arg1: i32, %arg2: memref<16x300xf32, #tpu.memory_space<vmem>>, %arg3: memref<300x1200xf32, #tpu.memory_space<vmem>>, %arg4: memref<1x1200xf32, #tpu.memory_space<vmem>>, %arg5: memref<1200x300xf32, #tpu.memory_space<vmem>>, %arg6: memref<1x300xf32, #tpu.memory_space<vmem>>, %arg7: memref<16x300xf32, #tpu.memory_space<vmem>>, %arg8: memref<16x300xf32, #tpu.memory_space<vmem>>) attributes {dimension_semantics = [#tpu.dimension_semantics<parallel>, #tpu.dimension_semantics<arbitrary>], iteration_bounds = array<i64: 1, 1>, scalar_prefetch = 0 : i64, scratch_operands = 1 : i64, tpu.core_type = #tpu.core_type<tc>, window_params = [{transform_indices = @transform_0, window_bounds = array<i64: 16, 300>}, {transform_indices = @transform_1, window_bounds = array<i64: 300, 1200>}, {transform_indices = @transform_2, window_bounds = array<i64: 1, 1200>}, {transform_indices = @transform_3, window_bounds = array<i64: 1200, 300>}, {pipeline_mode = #tpu.pipeline_mode<synchronous>, transform_indices = @transform_4, window_bounds = array<i64: 1, 300>}, {transform_indices = @transform_5, window_bounds = array<i64: 16, 300>}]} {
    %c0_i32 = arith.constant 0 : i32
    %0 = arith.cmpi eq, %arg1, %c0_i32 : i32
    %1 = arith.extui %0 : i1 to i32
    %c0_i32_0 = arith.constant 0 : i32
    %2 = arith.cmpi ne, %1, %c0_i32_0 : i32
    scf.if %2 {
      %cst_16 = arith.constant 0.000000e+00 : f32
      %19 = vector.broadcast %cst_16 : f32 to vector<16x300xf32>
      %c0_17 = arith.constant 0 : index
      %c0_18 = arith.constant 0 : index
      %20 = vector.load %arg8[%c0_17, %c0_18] : memref<16x300xf32, #tpu.memory_space<vmem>>, vector<16x300xf32>
      tpu.vector_store %arg8[%c0_17, %c0_18], %19 {strides = array<i32>} : memref<16x300xf32, #tpu.memory_space<vmem>>, vector<16x300xf32>,
    } else {
    }
    %c0 = arith.constant 0 : index
    %c0_1 = arith.constant 0 : index
    %3 = vector.load %arg2[%c0, %c0_1] : memref<16x300xf32, #tpu.memory_space<vmem>>, vector<16x300xf32>
    %c0_2 = arith.constant 0 : index
    %c0_3 = arith.constant 0 : index
    %4 = vector.load %arg3[%c0_2, %c0_3] : memref<300x1200xf32, #tpu.memory_space<vmem>>, vector<300x1200xf32>
    %cst = arith.constant dense<0.000000e+00> : vector<16x1200xf32>
    %5 = tpu.matmul %3, %4, %cst {dimension_numbers = #tpu.dot_dimension_numbers<[1], [0], [0], [1], [0, 0, 1, 1], [], []>} : vector<16x300xf32>, vector<300x1200xf32>, vector<16x1200xf32> -> vector<16x1200xf32>
    %c0_4 = arith.constant 0 : index
    %c0_5 = arith.constant 0 : index
    %6 = vector.load %arg4[%c0_4, %c0_5] : memref<1x1200xf32, #tpu.memory_space<vmem>>, vector<1x1200xf32>
    %7 = vector.broadcast %6 : vector<1x1200xf32> to vector<16x1200xf32>
    %8 = arith.addf %5, %7 : vector<16x1200xf32>
    %cst_6 = arith.constant 0.000000e+00 : f32
    %9 = vector.broadcast %cst_6 : f32 to vector<16x1200xf32>
    %10 = arith.maximumf %8, %9 : vector<16x1200xf32>
    %c0_7 = arith.constant 0 : index
    %c0_8 = arith.constant 0 : index
    %11 = vector.load %arg8[%c0_7, %c0_8] : memref<16x300xf32, #tpu.memory_space<vmem>>, vector<16x300xf32>
    %c0_9 = arith.constant 0 : index
    %c0_10 = arith.constant 0 : index
    %12 = vector.load %arg5[%c0_9, %c0_10] : memref<1200x300xf32, #tpu.memory_space<vmem>>, vector<1200x300xf32>
    %cst_11 = arith.constant dense<0.000000e+00> : vector<16x300xf32>
    %13 = tpu.matmul %10, %12, %cst_11 {dimension_numbers = #tpu.dot_dimension_numbers<[1], [0], [0], [1], [0, 0, 1, 1], [], []>} : vector<16x1200xf32>, vector<1200x300xf32>, vector<16x300xf32> -> vector<16x300xf32>
    %14 = arith.addf %11, %13 : vector<16x300xf32>
    %c0_12 = arith.constant 0 : index
    %c0_13 = arith.constant 0 : index
    %15 = vector.load %arg8[%c0_12, %c0_13] : memref<16x300xf32, #tpu.memory_space<vmem>>, vector<16x300xf32>
    tpu.vector_store %arg8[%c0_12, %c0_13], %14 {strides = array<i32>} : memref<16x300xf32, #tpu.memory_space<vmem>>, vector<16x300xf32>,
    %c0_i32_14 = arith.constant 0 : i32
    %16 = arith.cmpi eq, %arg1, %c0_i32_14 : i32
    %17 = arith.extui %16 : i1 to i32
    %c0_i32_15 = arith.constant 0 : i32
    %18 = arith.cmpi ne, %17, %c0_i32_15 : i32
    scf.if %18 {
      %c0_16 = arith.constant 0 : index
      %c0_17 = arith.constant 0 : index
      %19 = vector.load %arg8[%c0_16, %c0_17] : memref<16x300xf32, #tpu.memory_space<vmem>>, vector<16x300xf32>
      %c0_18 = arith.constant 0 : index
      %c0_19 = arith.constant 0 : index
      %20 = vector.load %arg6[%c0_18, %c0_19] : memref<1x300xf32, #tpu.memory_space<vmem>>, vector<1x300xf32>
      %21 = vector.broadcast %20 : vector<1x300xf32> to vector<16x300xf32>
      %22 = arith.addf %19, %21 : vector<16x300xf32>
      %c0_20 = arith.constant 0 : index
      %c0_21 = arith.constant 0 : index
      %23 = vector.load %arg7[%c0_20, %c0_21] : memref<16x300xf32, #tpu.memory_space<vmem>>, vector<16x300xf32>
      tpu.vector_store %arg7[%c0_20, %c0_21], %22 {strides = array<i32>} : memref<16x300xf32, #tpu.memory_space<vmem>>, vector<16x300xf32>,
    } else {
    }
    return
  }
  func.func @transform_0(%arg0: i32, %arg1: i32) -> (i32, i32) {
    %c0_i32 = arith.constant 0 : i32
    %c0_i32_0 = arith.constant 0 : i32
    return %arg0, %c0_i32 : i32, i32
  }
  func.func @transform_1(%arg0: i32, %arg1: i32) -> (i32, i32) {
    %c0_i32 = arith.constant 0 : i32
    %c0_i32_0 = arith.constant 0 : i32
    return %c0_i32, %arg1 : i32, i32
  }
  func.func @transform_2(%arg0: i32, %arg1: i32) -> (i32, i32) {
    %c0_i32 = arith.constant 0 : i32
    %c0_i32_0 = arith.constant 0 : i32
    return %c0_i32, %arg1 : i32, i32
  }
  func.func @transform_3(%arg0: i32, %arg1: i32) -> (i32, i32) {
    %c0_i32 = arith.constant 0 : i32
    %c0_i32_0 = arith.constant 0 : i32
    return %arg1, %c0_i32 : i32, i32
  }
  func.func @transform_4(%arg0: i32, %arg1: i32) -> (i32, i32) {
    %c0_i32 = arith.constant 0 : i32
    %c0_i32_0 = arith.constant 0 : i32
    %c0_i32_1 = arith.constant 0 : i32
    return %c0_i32, %c0_i32_0 : i32, i32
  }
  func.func @transform_5(%arg0: i32, %arg1: i32) -> (i32, i32) {
    %c0_i32 = arith.constant 0 : i32
    %c0_i32_0 = arith.constant 0 : i32
    return %arg0, %c0_i32 : i32, i32
  }
}

</mosaic_0001>

<llo_original>
// kernel: tpu_custom_call.1
$region0: #{tpu_custom_call.1}
  #allocation0 [shape = 'u32[]', space=smem, size = 0x4, offset = 0x4, fixed_abs, tag = 'smem constant byte address 0x4 - core index']
  #allocation1 [shape = 'u32[144,128]{1,0:T(1,128)}', space=vmem, size = 0x12000, scoped, tag = 'internal scratch']
  #allocation2 [shape = 'f32[16,300]{1,0:T(8,128)}', space=vmem, size = 0x6000, scoped, tag = 'scratch operand']
  %s0 = inlined_call_operand.vmem [shape: f32[16,300], index: 0, kind: input, shape index: {}]
  %s1 = inlined_call_operand.vmem [shape: f32[300,1200], index: 1, kind: input, shape index: {}]
  %s2 = inlined_call_operand.vmem [shape: f32[1,1200], index: 2, kind: input, shape index: {}]
  %s3 = inlined_call_operand.vmem [shape: f32[1200,300], index: 3, kind: input, shape index: {}]
  %s4 = inlined_call_operand.vmem [shape: f32[1,300], index: 4, kind: input, shape index: {}]
  %s5 = inlined_call_operand.hbm [shape: f32[16,300], index: 5, kind: output, shape index: {}]
  %s6 = sld [smem:[#allocation0]]
  $region38: #{tpu_custom_call.1} parent=0
    _
  %s8 = ssub.s32 1, %s6
  %s9 = scalar_select 0, %s8, %s6
  $region1: #{tpu_custom_call.1} parent=0
    #allocation3 [shape = 'u8[24576]{0}', space=vmem, size = 0x6000, scoped, tag = 'output window, operand 0, single buffered']
    #allocation4 [shape = 's32[1]{0}', space=sflag, size = 0x4, scoped, tag = 'scoped memory for tpu_custom_call.1']
    %10 = vsyncpa [#allocation4], 0
    // Predicated region
    $region2: #{tpu_custom_call.1} parent=1 // pred_check
      _
    $region3: #{tpu_custom_call.1} parent=1 // pred_check_branch
      %12 = sbr.rel (0) target = $region5
    $region4: #{tpu_custom_call.1} parent=1 // pred_region
      _
    $region5: #{tpu_custom_call.1} parent=1 // pred_fallthru
      _
    // Predicated region
    $region6: #{tpu_custom_call.1} parent=1 // pred_check
      _
    $region7: #{tpu_custom_call.1} parent=1 // pred_check_branch
      %14 = sbr.rel (0) target = $region9
    $region8: #{tpu_custom_call.1} parent=1 // pred_region
      _
    $region9: #{tpu_custom_call.1} parent=1 // pred_fallthru
      _
    // Predicated region
    $region10: #{tpu_custom_call.1} parent=1 // pred_check
      _
    $region11: #{tpu_custom_call.1} parent=1 // pred_check_branch
      %16 = sbr.rel (0) target = $region13
    $region12: #{tpu_custom_call.1} parent=1 // pred_region
      _
    $region13: #{tpu_custom_call.1} parent=1 // pred_fallthru
      _
    // Predicated region
    $region14: #{tpu_custom_call.1} parent=1 // pred_check
      _
    $region15: #{tpu_custom_call.1} parent=1 // pred_check_branch
      %18 = sbr.rel (0) target = $region17
    $region16: #{tpu_custom_call.1} parent=1 // pred_region
      _
    $region17: #{tpu_custom_call.1} parent=1 // pred_fallthru
      _
    // Predicated region
    $region18: #{tpu_custom_call.1} parent=1 // pred_check
      _
    $region19: #{tpu_custom_call.1} parent=1 // pred_check_branch
      %20 = sbr.rel (0) target = $region21
    $region20: #{tpu_custom_call.1} parent=1 // pred_region
      _
    $region21: #{tpu_custom_call.1} parent=1 // pred_fallthru
      _
    %p21 = scmp.eq.s32.totalorder 0, 0
    // Predicated region
    $region22: #{tpu_custom_call.1} parent=1 // pred_check
      %p22 = pneg %p21
    $region23: #{tpu_custom_call.1} parent=1 // pred_check_branch
      %24 = sbr.rel (%p22) target = $region25
    $region24: #{tpu_custom_call.1} parent=1 // pred_region
      %25 = vst [vmem:[#allocation2] sm:$0xff] 0.0
      %26 = vst [vmem:[#allocation2 + $0x8] sm:$0xff] 0.0
      %vm27 = vcmask 359424
      %28 = vst.msk [vmem:[#allocation2 + $0x10] sm:$0xff] %vm27, 0.0
      %29 = vst [vmem:[#allocation2 + $0x18] sm:$0xff] 0.0
      %30 = vst [vmem:[#allocation2 + $0x20] sm:$0xff] 0.0
      %31 = vst.msk [vmem:[#allocation2 + $0x28] sm:$0xff] %vm27, 0.0
    $region25: #{tpu_custom_call.1} parent=1 // pred_fallthru
      _
    %v32 = vld [vmem:[%s0] sm:$0xff]
    %v33 = vld [vmem:[%s0 + $0x8] sm:$0xff]
    %v34 = vld [vmem:[%s0 + $0x10] sm:$0xff]
    %v35 = vld [vmem:[%s0 + $0x18] sm:$0xff]
    %v36 = vld [vmem:[%s0 + $0x20] sm:$0xff]
    %v37 = vld [vmem:[%s0 + $0x28] sm:$0xff]
    %v38 = vld [vmem:[%s1] sm:$0xff]
    %v39 = vld [vmem:[%s1 + $0x8] sm:$0xff]
    %v40 = vld [vmem:[%s1 + $0x10] sm:$0xff]
    %v41 = vld [vmem:[%s1 + $0x18] sm:$0xff]
    %v42 = vld [vmem:[%s1 + $0x20] sm:$0xff]
    %v43 = vld [vmem:[%s1 + $0x28] sm:$0xff]
    %v44 = vld [vmem:[%s1 + $0x30] sm:$0xff]
    %v45 = vld [vmem:[%s1 + $0x38] sm:$0xff]
    %v46 = vld [vmem:[%s1 + $0x40] sm:$0xff]
    %v47 = vld [vmem:[%s1 + $0x48] sm:$0xff]
    %v48 = vld [vmem:[%s1 + $0x50] sm:$0xff]
    %v49 = vld [vmem:[%s1 + $0x58] sm:$0xff]
    %v50 = vld [vmem:[%s1 + $0x60] sm:$0xff]
    %v51 = vld [vmem:[%s1 + $0x68] sm:$0xff]
    %v52 = vld [vmem:[%s1 + $0x70] sm:$0xff]
    %v53 = vld [vmem:[%s1 + $0x78] sm:$0xff]
    %v54 = vld [vmem:[%s1 + $0x80] sm:$0xff]
    %v55 = vld [vmem:[%s1 + $0x88] sm:$0xff]
    %v56 = vld [vmem:[%s1 + $0x90] sm:$0xff]
    %v57 = vld [vmem:[%s1 + $0x98] sm:$0xff]
    %v58 = vld [vmem:[%s1 + $0xa0] sm:$0xff]
    %v59 = vld [vmem:[%s1 + $0xa8] sm:$0xff]
    %v60 = vld [vmem:[%s1 + $0xb0] sm:$0xff]
    %v61 = vld [vmem:[%s1 + $0xb8] sm:$0xff]
    %v62 = vld [vmem:[%s1 + $0xc0] sm:$0xff]
    %v63 = vld [vmem:[%s1 + $0xc8] sm:$0xff]
    %v64 = vld [vmem:[%s1 + $0xd0] sm:$0xff]
    %v65 = vld [vmem:[%s1 + $0xd8] sm:$0xff]
    %v66 = vld [vmem:[%s1 + $0xe0] sm:$0xff]
    %v67 = vld [vmem:[%s1 + $0xe8] sm:$0xff]
    %v68 = vld [vmem:[%s1 + $0xf0] sm:$0xff]
    %v69 = vld [vmem:[%s1 + $0xf8] sm:$0xff]
    %v70 = vld [vmem:[%s1 + $0x100] sm:$0xff]
    %v71 = vld [vmem:[%s1 + $0x108] sm:$0xff]
    %v72 = vld [vmem:[%s1 + $0x110] sm:$0xff]
    %v73 = vld [vmem:[%s1 + $0x118] sm:$0xff]
    %v74 = vld [vmem:[%s1 + $0x120] sm:$0xff]
    %v75 = vld [vmem:[%s1 + $0x128] sm:$0xff]
    %v76 = vld [vmem:[%s1 + $0x130] sm:$0xff]
    %v77 = vld [vmem:[%s1 + $0x138] sm:$0xff]
    %v78 = vld [vmem:[%s1 + $0x140] sm:$0xff]
    %v79 = vld [vmem:[%s1 + $0x148] sm:$0xff]
    %v80 = vld [vmem:[%s1 + $0x150] sm:$0xff]
    %v81 = vld [vmem:[%s1 + $0x158] sm:$0xff]
    %v82 = vld [vmem:[%s1 + $0x160] sm:$0xff]
    %v83 = vld [vmem:[%s1 + $0x168] sm:$0xff]
    %v84 = vld [vmem:[%s1 + $0x170] sm:$0xff]
    %v85 = vld [vmem:[%s1 + $0x178] sm:$0xff]
    %v86 = vld [vmem:[%s1 + $0x180] sm:$0xff]
    %v87 = vld [vmem:[%s1 + $0x188] sm:$0xff]
    %v88 = vld [vmem:[%s1 + $0x190] sm:$0xff]
    %v89 = vld [vmem:[%s1 + $0x198] sm:$0xff]
    %v90 = vld [vmem:[%s1 + $0x1a0] sm:$0xff]
    %v91 = vld [vmem:[%s1 + $0x1a8] sm:$0xff]
    %v92 = vld [vmem:[%s1 + $0x1b0] sm:$0xff]
    %v93 = vld [vmem:[%s1 + $0x1b8] sm:$0xff]
    %v94 = vld [vmem:[%s1 + $0x1c0] sm:$0xff]
    %v95 = vld [vmem:[%s1 + $0x1c8] sm:$0xff]
    %v96 = vld [vmem:[%s1 + $0x1d0] sm:$0xff]
    %v97 = vld [vmem:[%s1 + $0x1d8] sm:$0xff]
    %v98 = vld [vmem:[%s1 + $0x1e0] sm:$0xff]
    %v99 = vld [vmem:[%s1 + $0x1e8] sm:$0xff]
    %v100 = vld [vmem:[%s1 + $0x1f0] sm:$0xff]
    %v101 = vld [vmem:[%s1 + $0x1f8] sm:$0xff]
    %v102 = vld [vmem:[%s1 + $0x200] sm:$0xff]
    %v103 = vld [vmem:[%s1 + $0x208] sm:$0xff]
    %v104 = vld [vmem:[%s1 + $0x210] sm:$0xff]
    %v105 = vld [vmem:[%s1 + $0x218] sm:$0xff]
    %v106 = vld [vmem:[%s1 + $0x220] sm:$0xff]
    %v107 = vld [vmem:[%s1 + $0x228] sm:$0xff]
    %v108 = vld [vmem:[%s1 + $0x230] sm:$0xff]
    %v109 = vld [vmem:[%s1 + $0x238] sm:$0xff]
    %v110 = vld [vmem:[%s1 + $0x240] sm:$0xff]
    %v111 = vld [vmem:[%s1 + $0x248] sm:$0xff]
    %v112 = vld [vmem:[%s1 + $0x250] sm:$0xff]
    %v113 = vld [vmem:[%s1 + $0x258] sm:$0xff]
    %v114 = vld [vmem:[%s1 + $0x260] sm:$0xff]
    %v115 = vld [vmem:[%s1 + $0x268] sm:$0xff]
    %v116 = vld [vmem:[%s1 + $0x270] sm:$0xff]
    %v117 = vld [vmem:[%s1 + $0x278] sm:$0xff]
    %v118 = vld [vmem:[%s1 + $0x280] sm:$0xff]
    %v119 = vld [vmem:[%s1 + $0x288] sm:$0xff]
    %v120 = vld [vmem:[%s1 + $0x290] sm:$0xff]
    %v121 = vld [vmem:[%s1 + $0x298] sm:$0xff]
    %v122 = vld [vmem:[%s1 + $0x2a0] sm:$0xff]
    %v123 = vld [vmem:[%s1 + $0x2a8] sm:$0xff]
    %v124 = vld [vmem:[%s1 + $0x2b0] sm:$0xff]
    %v125 = vld [vmem:[%s1 + $0x2b8] sm:$0xff]
    %v126 = vld [vmem:[%s1 + $0x2c0] sm:$0xff]
    %v127 = vld [vmem:[%s1 + $0x2c8] sm:$0xff]
    %v128 = vld [vmem:[%s1 + $0x2d0] sm:$0xff]
    %v129 = vld [vmem:[%s1 + $0x2d8] sm:$0xff]
    %v130 = vld [vmem:[%s1 + $0x2e0] sm:$0xff]
    %v131 = vld [vmem:[%s1 + $0x2e8] sm:$0xff]
    %v132 = vld [vmem:[%s1 + $0x2f0] sm:$0xff]
    %v133 = vld [vmem:[%s1 + $0x2f8] sm:$0xff]
    %v134 = vld [vmem:[%s1 + $0x300] sm:$0xff]
    %v135 = vld [vmem:[%s1 + $0x308] sm:$0xff]
    %v136 = vld [vmem:[%s1 + $0x310] sm:$0xff]
    %v137 = vld [vmem:[%s1 + $0x318] sm:$0xff]
    %v138 = vld [vmem:[%s1 + $0x320] sm:$0xff]
    %v139 = vld [vmem:[%s1 + $0x328] sm:$0xff]
    %v140 = vld [vmem:[%s1 + $0x330] sm:$0xff]
    %v141 = vld [vmem:[%s1 + $0x338] sm:$0xff]
    %v142 = vld [vmem:[%s1 + $0x340] sm:$0xff]
    %v143 = vld [vmem:[%s1 + $0x348] sm:$0xff]
    %v144 = vld [vmem:[%s1 + $0x350] sm:$0xff]
    %v145 = vld [vmem:[%s1 + $0x358] sm:$0xff]
    %v146 = vld [vmem:[%s1 + $0x360] sm:$0xff]
    %v147 = vld [vmem:[%s1 + $0x368] sm:$0xff]
    %v148 = vld [vmem:[%s1 + $0x370] sm:$0xff]
    %v149 = vld [vmem:[%s1 + $0x378] sm:$0xff]
    %v150 = vld [vmem:[%s1 + $0x380] sm:$0xff]
    %v151 = vld [vmem:[%s1 + $0x388] sm:$0xff]
    %v152 = vld [vmem:[%s1 + $0x390] sm:$0xff]
    %v153 = vld [vmem:[%s1 + $0x398] sm:$0xff]
    %v154 = vld [vmem:[%s1 + $0x3a0] sm:$0xff]
    %v155 = vld [vmem:[%s1 + $0x3a8] sm:$0xff]
    %v156 = vld [vmem:[%s1 + $0x3b0] sm:$0xff]
    %v157 = vld [vmem:[%s1 + $0x3b8] sm:$0xff]
    %v158 = vld [vmem:[%s1 + $0x3c0] sm:$0xff]
    %v159 = vld [vmem:[%s1 + $0x3c8] sm:$0xff]
    %v160 = vld [vmem:[%s1 + $0x3d0] sm:$0xff]
    %v161 = vld [vmem:[%s1 + $0x3d8] sm:$0xff]
    %v162 = vld [vmem:[%s1 + $0x3e0] sm:$0xff]
    %v163 = vld [vmem:[%s1 + $0x3e8] sm:$0xff]
    %v164 = vld [vmem:[%s1 + $0x3f0] sm:$0xff]
    %v165 = vld [vmem:[%s1 + $0x3f8] sm:$0xff]
    %v166 = vld [vmem:[%s1 + $0x400] sm:$0xff]
    %v167 = vld [vmem:[%s1 + $0x408] sm:$0xff]
    %v168 = vld [vmem:[%s1 + $0x410] sm:$0xff]
    %v169 = vld [vmem:[%s1 + $0x418] sm:$0xff]
    %v170 = vld [vmem:[%s1 + $0x420] sm:$0xff]
    %v171 = vld [vmem:[%s1 + $0x428] sm:$0xff]
    %v172 = vld [vmem:[%s1 + $0x430] sm:$0xff]
    %v173 = vld [vmem:[%s1 + $0x438] sm:$0xff]
    %v174 = vld [vmem:[%s1 + $0x440] sm:$0xff]
    %v175 = vld [vmem:[%s1 + $0x448] sm:$0xff]
    %v176 = vld [vmem:[%s1 + $0x450] sm:$0xff]
    %v177 = vld [vmem:[%s1 + $0x458] sm:$0xff]
    %v178 = vld [vmem:[%s1 + $0x460] sm:$0xff]
    %v179 = vld [vmem:[%s1 + $0x468] sm:$0xff]
    %v180 = vld [vmem:[%s1 + $0x470] sm:$0xff]
    %v181 = vld [vmem:[%s1 + $0x478] sm:$0xff]
    %v182 = vld [vmem:[%s1 + $0x480] sm:$0xff]
    %v183 = vld [vmem:[%s1 + $0x488] sm:$0xff]
    %v184 = vld [vmem:[%s1 + $0x490] sm:$0xff]
    %v185 = vld [vmem:[%s1 + $0x498] sm:$0xff]
    %v186 = vld [vmem:[%s1 + $0x4a0] sm:$0xff]
    %v187 = vld [vmem:[%s1 + $0x4a8] sm:$0xff]
    %v188 = vld [vmem:[%s1 + $0x4b0] sm:$0xff]
    %v189 = vld [vmem:[%s1 + $0x4b8] sm:$0xff]
    %v190 = vld [vmem:[%s1 + $0x4c0] sm:$0xff]
    %v191 = vld [vmem:[%s1 + $0x4c8] sm:$0xff]
    %v192 = vld [vmem:[%s1 + $0x4d0] sm:$0xff]
    %v193 = vld [vmem:[%s1 + $0x4d8] sm:$0xff]
    %v194 = vld [vmem:[%s1 + $0x4e0] sm:$0xff]
    %v195 = vld [vmem:[%s1 + $0x4e8] sm:$0xff]
    %v196 = vld [vmem:[%s1 + $0x4f0] sm:$0xff]
    %v197 = vld [vmem:[%s1 + $0x4f8] sm:$0xff]
    %v198 = vld [vmem:[%s1 + $0x500] sm:$0xff]
    %v199 = vld [vmem:[%s1 + $0x508] sm:$0xff]
    %v200 = vld [vmem:[%s1 + $0x510] sm:$0xff]
    %v201 = vld [vmem:[%s1 + $0x518] sm:$0xff]
    %v202 = vld [vmem:[%s1 + $0x520] sm:$0xff]
    %v203 = vld [vmem:[%s1 + $0x528] sm:$0xff]
    %v204 = vld [vmem:[%s1 + $0x530] sm:$0xff]
    %v205 = vld [vmem:[%s1 + $0x538] sm:$0xff]
    %v206 = vld [vmem:[%s1 + $0x540] sm:$0xff]
    %v207 = vld [vmem:[%s1 + $0x548] sm:$0xff]
    %v208 = vld [vmem:[%s1 + $0x550] sm:$0xff]
    %v209 = vld [vmem:[%s1 + $0x558] sm:$0xff]
    %v210 = vld [vmem:[%s1 + $0x560] sm:$0xff]
    %v211 = vld [vmem:[%s1 + $0x568] sm:$0xff]
    %v212 = vld [vmem:[%s1 + $0x570] sm:$0xff]
    %v213 = vld [vmem:[%s1 + $0x578] sm:$0xff]
    %v214 = vld [vmem:[%s1 + $0x580] sm:$0xff]
    %v215 = vld [vmem:[%s1 + $0x588] sm:$0xff]
    %v216 = vld [vmem:[%s1 + $0x590] sm:$0xff]
    %v217 = vld [vmem:[%s1 + $0x598] sm:$0xff]
    %v218 = vld [vmem:[%s1 + $0x5a0] sm:$0xff]
    %v219 = vld [vmem:[%s1 + $0x5a8] sm:$0xff]
    %v220 = vld [vmem:[%s1 + $0x5b0] sm:$0xff]
    %v221 = vld [vmem:[%s1 + $0x5b8] sm:$0xff]
    %v222 = vld [vmem:[%s1 + $0x5c0] sm:$0xff]
    %v223 = vld [vmem:[%s1 + $0x5c8] sm:$0xff]
    %v224 = vld [vmem:[%s1 + $0x5d0] sm:$0xff]
    %v225 = vld [vmem:[%s1 + $0x5d8] sm:$0xff]
    %v226 = vld [vmem:[%s1 + $0x5e0] sm:$0xff]
    %v227 = vld [vmem:[%s1 + $0x5e8] sm:$0xff]
    %v228 = vld [vmem:[%s1 + $0x5f0] sm:$0xff]
    %v229 = vld [vmem:[%s1 + $0x5f8] sm:$0xff]
    %v230 = vld [vmem:[%s1 + $0x600] sm:$0xff]
    %v231 = vld [vmem:[%s1 + $0x608] sm:$0xff]
    %v232 = vld [vmem:[%s1 + $0x610] sm:$0xff]
    %v233 = vld [vmem:[%s1 + $0x618] sm:$0xff]
    %v234 = vld [vmem:[%s1 + $0x620] sm:$0xff]
    %v235 = vld [vmem:[%s1 + $0x628] sm:$0xff]
    %v236 = vld [vmem:[%s1 + $0x630] sm:$0xff]
    %v237 = vld [vmem:[%s1 + $0x638] sm:$0xff]
    %v238 = vld [vmem:[%s1 + $0x640] sm:$0xff]
    %v239 = vld [vmem:[%s1 + $0x648] sm:$0xff]
    %v240 = vld [vmem:[%s1 + $0x650] sm:$0xff]
    %v241 = vld [vmem:[%s1 + $0x658] sm:$0xff]
    %v242 = vld [vmem:[%s1 + $0x660] sm:$0xff]
    %v243 = vld [vmem:[%s1 + $0x668] sm:$0xff]
    %v244 = vld [vmem:[%s1 + $0x670] sm:$0xff]
    %v245 = vld [vmem:[%s1 + $0x678] sm:$0xff]
    %v246 = vld [vmem:[%s1 + $0x680] sm:$0xff]
    %v247 = vld [vmem:[%s1 + $0x688] sm:$0xff]
    %v248 = vld [vmem:[%s1 + $0x690] sm:$0xff]
    %v249 = vld [vmem:[%s1 + $0x698] sm:$0xff]
    %v250 = vld [vmem:[%s1 + $0x6a0] sm:$0xff]
    %v251 = vld [vmem:[%s1 + $0x6a8] sm:$0xff]
    %v252 = vld [vmem:[%s1 + $0x6b0] sm:$0xff]
    %v253 = vld [vmem:[%s1 + $0x6b8] sm:$0xff]
    %v254 = vld [vmem:[%s1 + $0x6c0] sm:$0xff]
    %v255 = vld [vmem:[%s1 + $0x6c8] sm:$0xff]
    %v256 = vld [vmem:[%s1 + $0x6d0] sm:$0xff]
    %v257 = vld [vmem:[%s1 + $0x6d8] sm:$0xff]
    %v258 = vld [vmem:[%s1 + $0x6e0] sm:$0xff]
    %v259 = vld [vmem:[%s1 + $0x6e8] sm:$0xff]
    %v260 = vld [vmem:[%s1 + $0x6f0] sm:$0xff]
    %v261 = vld [vmem:[%s1 + $0x6f8] sm:$0xff]
    %v262 = vld [vmem:[%s1 + $0x700] sm:$0xff]
    %v263 = vld [vmem:[%s1 + $0x708] sm:$0xff]
    %v264 = vld [vmem:[%s1 + $0x710] sm:$0xff]
    %v265 = vld [vmem:[%s1 + $0x718] sm:$0xff]
    %v266 = vld [vmem:[%s1 + $0x720] sm:$0xff]
    %v267 = vld [vmem:[%s1 + $0x728] sm:$0xff]
    %v268 = vld [vmem:[%s1 + $0x730] sm:$0xff]
    %v269 = vld [vmem:[%s1 + $0x738] sm:$0xff]
    %v270 = vld [vmem:[%s1 + $0x740] sm:$0xff]
    %v271 = vld [vmem:[%s1 + $0x748] sm:$0xff]
    %v272 = vld [vmem:[%s1 + $0x750] sm:$0xff]
    %v273 = vld [vmem:[%s1 + $0x758] sm:$0xff]
    %v274 = vld [vmem:[%s1 + $0x760] sm:$0xff]
    %v275 = vld [vmem:[%s1 + $0x768] sm:$0xff]
    %v276 = vld [vmem:[%s1 + $0x770] sm:$0xff]
    %v277 = vld [vmem:[%s1 + $0x778] sm:$0xff]
    %v278 = vld [vmem:[%s1 + $0x780] sm:$0xff]
    %v279 = vld [vmem:[%s1 + $0x788] sm:$0xff]
    %v280 = vld [vmem:[%s1 + $0x790] sm:$0xff]
    %v281 = vld [vmem:[%s1 + $0x798] sm:$0xff]
    %v282 = vld [vmem:[%s1 + $0x7a0] sm:$0xff]
    %v283 = vld [vmem:[%s1 + $0x7a8] sm:$0xff]
    %v284 = vld [vmem:[%s1 + $0x7b0] sm:$0xff]
    %v285 = vld [vmem:[%s1 + $0x7b8] sm:$0xff]
    %v286 = vld [vmem:[%s1 + $0x7c0] sm:$0xff]
    %v287 = vld [vmem:[%s1 + $0x7c8] sm:$0xff]
    %v288 = vld [vmem:[%s1 + $0x7d0] sm:$0xff]
    %v289 = vld [vmem:[%s1 + $0x7d8] sm:$0xff]
    %v290 = vld [vmem:[%s1 + $0x7e0] sm:$0xff]
    %v291 = vld [vmem:[%s1 + $0x7e8] sm:$0xff]
    %v292 = vld [vmem:[%s1 + $0x7f0] sm:$0xff]
    %v293 = vld [vmem:[%s1 + $0x7f8] sm:$0xff]
    %v294 = vld [vmem:[%s1 + $0x800] sm:$0xff]
    %v295 = vld [vmem:[%s1 + $0x808] sm:$0xff]
    %v296 = vld [vmem:[%s1 + $0x810] sm:$0xff]
    %v297 = vld [vmem:[%s1 + $0x818] sm:$0xff]
    %v298 = vld [vmem:[%s1 + $0x820] sm:$0xff]
    %v299 = vld [vmem:[%s1 + $0x828] sm:$0xff]
    %v300 = vld [vmem:[%s1 + $0x830] sm:$0xff]
    %v301 = vld [vmem:[%s1 + $0x838] sm:$0xff]
    %v302 = vld [vmem:[%s1 + $0x840] sm:$0xff]
    %v303 = vld [vmem:[%s1 + $0x848] sm:$0xff]
    %v304 = vld [vmem:[%s1 + $0x850] sm:$0xff]
    %v305 = vld [vmem:[%s1 + $0x858] sm:$0xff]
    %v306 = vld [vmem:[%s1 + $0x860] sm:$0xff]
    %v307 = vld [vmem:[%s1 + $0x868] sm:$0xff]
    %v308 = vld [vmem:[%s1 + $0x870] sm:$0xff]
    %v309 = vld [vmem:[%s1 + $0x878] sm:$0xff]
    %v310 = vld [vmem:[%s1 + $0x880] sm:$0xff]
    %v311 = vld [vmem:[%s1 + $0x888] sm:$0xff]
    %v312 = vld [vmem:[%s1 + $0x890] sm:$0xff]
    %v313 = vld [vmem:[%s1 + $0x898] sm:$0xff]
    %v314 = vld [vmem:[%s1 + $0x8a0] sm:$0xff]
    %v315 = vld [vmem:[%s1 + $0x8a8] sm:$0xff]
    %v316 = vld [vmem:[%s1 + $0x8b0] sm:$0xff]
    %v317 = vld [vmem:[%s1 + $0x8b8] sm:$0xff]
    %v318 = vld [vmem:[%s1 + $0x8c0] sm:$0xff]
    %v319 = vld [vmem:[%s1 + $0x8c8] sm:$0xff]
    %v320 = vld [vmem:[%s1 + $0x8d0] sm:$0xff]
    %v321 = vld [vmem:[%s1 + $0x8d8] sm:$0xff]
    %v322 = vld [vmem:[%s1 + $0x8e0] sm:$0xff]
    %v323 = vld [vmem:[%s1 + $0x8e8] sm:$0xff]
    %v324 = vld [vmem:[%s1 + $0x8f0] sm:$0xff]
    %v325 = vld [vmem:[%s1 + $0x8f8] sm:$0xff]
    %v326 = vld [vmem:[%s1 + $0x900] sm:$0xff]
    %v327 = vld [vmem:[%s1 + $0x908] sm:$0xff]
    %v328 = vld [vmem:[%s1 + $0x910] sm:$0xff]
    %v329 = vld [vmem:[%s1 + $0x918] sm:$0xff]
    %v330 = vld [vmem:[%s1 + $0x920] sm:$0xff]
    %v331 = vld [vmem:[%s1 + $0x928] sm:$0xff]
    %v332 = vld [vmem:[%s1 + $0x930] sm:$0xff]
    %v333 = vld [vmem:[%s1 + $0x938] sm:$0xff]
    %v334 = vld [vmem:[%s1 + $0x940] sm:$0xff]
    %v335 = vld [vmem:[%s1 + $0x948] sm:$0xff]
    %v336 = vld [vmem:[%s1 + $0x950] sm:$0xff]
    %v337 = vld [vmem:[%s1 + $0x958] sm:$0xff]
    %v338 = vld [vmem:[%s1 + $0x960] sm:$0xff]
    %v339 = vld [vmem:[%s1 + $0x968] sm:$0xff]
    %v340 = vld [vmem:[%s1 + $0x970] sm:$0xff]
    %v341 = vld [vmem:[%s1 + $0x978] sm:$0xff]
    %v342 = vld [vmem:[%s1 + $0x980] sm:$0xff]
    %v343 = vld [vmem:[%s1 + $0x988] sm:$0xff]
    %v344 = vld [vmem:[%s1 + $0x990] sm:$0xff]
    %v345 = vld [vmem:[%s1 + $0x998] sm:$0xff]
    %v346 = vld [vmem:[%s1 + $0x9a0] sm:$0xff]
    %v347 = vld [vmem:[%s1 + $0x9a8] sm:$0xff]
    %v348 = vld [vmem:[%s1 + $0x9b0] sm:$0xff]
    %v349 = vld [vmem:[%s1 + $0x9b8] sm:$0xff]
    %v350 = vld [vmem:[%s1 + $0x9c0] sm:$0xff]
    %v351 = vld [vmem:[%s1 + $0x9c8] sm:$0xff]
    %v352 = vld [vmem:[%s1 + $0x9d0] sm:$0xff]
    %v353 = vld [vmem:[%s1 + $0x9d8] sm:$0xff]
    %v354 = vld [vmem:[%s1 + $0x9e0] sm:$0xff]
    %v355 = vld [vmem:[%s1 + $0x9e8] sm:$0xff]
    %v356 = vld [vmem:[%s1 + $0x9f0] sm:$0xff]
    %v357 = vld [vmem:[%s1 + $0x9f8] sm:$0xff]
    %v358 = vld [vmem:[%s1 + $0xa00] sm:$0xff]
    %v359 = vld [vmem:[%s1 + $0xa08] sm:$0xff]
    %v360 = vld [vmem:[%s1 + $0xa10] sm:$0xff]
    %v361 = vld [vmem:[%s1 + $0xa18] sm:$0xff]
    %v362 = vld [vmem:[%s1 + $0xa20] sm:$0xff]
    %v363 = vld [vmem:[%s1 + $0xa28] sm:$0xff]
    %v364 = vld [vmem:[%s1 + $0xa30] sm:$0xff]
    %v365 = vld [vmem:[%s1 + $0xa38] sm:$0xff]
    %v366 = vld [vmem:[%s1 + $0xa40] sm:$0xff]
    %v367 = vld [vmem:[%s1 + $0xa48] sm:$0xff]
    %v368 = vld [vmem:[%s1 + $0xa50] sm:$0xff]
    %v369 = vld [vmem:[%s1 + $0xa58] sm:$0xff]
    %v370 = vld [vmem:[%s1 + $0xa60] sm:$0xff]
    %v371 = vld [vmem:[%s1 + $0xa68] sm:$0xff]
    %v372 = vld [vmem:[%s1 + $0xa70] sm:$0xff]
    %v373 = vld [vmem:[%s1 + $0xa78] sm:$0xff]
    %v374 = vld [vmem:[%s1 + $0xa80] sm:$0xff]
    %v375 = vld [vmem:[%s1 + $0xa88] sm:$0xff]
    %v376 = vld [vmem:[%s1 + $0xa90] sm:$0xff]
    %v377 = vld [vmem:[%s1 + $0xa98] sm:$0xff]
    %v378 = vld [vmem:[%s1 + $0xaa0] sm:$0xff]
    %v379 = vld [vmem:[%s1 + $0xaa8] sm:$0xff]
    %v380 = vld [vmem:[%s1 + $0xab0] sm:$0xff]
    %v381 = vld [vmem:[%s1 + $0xab8] sm:$0xff]
    %v382 = vld [vmem:[%s1 + $0xac0] sm:$0xff]
    %v383 = vld [vmem:[%s1 + $0xac8] sm:$0xff]
    %v384 = vld [vmem:[%s1 + $0xad0] sm:$0xff]
    %v385 = vld [vmem:[%s1 + $0xad8] sm:$0xff]
    %v386 = vld [vmem:[%s1 + $0xae0] sm:$0xff]
    %v387 = vld [vmem:[%s1 + $0xae8] sm:$0xff]
    %v388 = vld [vmem:[%s1 + $0xaf0] sm:$0xff]
    %v389 = vld [vmem:[%s1 + $0xaf8] sm:$0xff]
    %v390 = vld [vmem:[%s1 + $0xb00] sm:$0xff]
    %v391 = vld [vmem:[%s1 + $0xb08] sm:$0xff]
    %v392 = vld [vmem:[%s1 + $0xb10] sm:$0xff]
    %v393 = vld [vmem:[%s1 + $0xb18] sm:$0xff]
    %v394 = vld [vmem:[%s1 + $0xb20] sm:$0xff]
    %v395 = vld [vmem:[%s1 + $0xb28] sm:$0xff]
    %v396 = vld [vmem:[%s1 + $0xb30] sm:$0xff]
    %v397 = vld [vmem:[%s1 + $0xb38] sm:$0xff]
    %v398 = vld [vmem:[%s1 + $0xb40] sm:$0xff]
    %v399 = vld [vmem:[%s1 + $0xb48] sm:$0xff]
    %v400 = vld [vmem:[%s1 + $0xb50] sm:$0xff]
    %v401 = vld [vmem:[%s1 + $0xb58] sm:$0xff]
    %v402 = vld [vmem:[%s1 + $0xb60] sm:$0xff]
    %v403 = vld [vmem:[%s1 + $0xb68] sm:$0xff]
    %v404 = vld [vmem:[%s1 + $0xb70] sm:$0xff]
    %v405 = vld [vmem:[%s1 + $0xb78] sm:$0xff]
    %v406 = vld [vmem:[%s1 + $0xb80] sm:$0xff]
    %v407 = vld [vmem:[%s1 + $0xb88] sm:$0xff]
    %v408 = vld [vmem:[%s1 + $0xb90] sm:$0xf]
    %v409 = vld [vmem:[%s1 + $0xb98] sm:$0xf]
    %v410 = vld [vmem:[%s1 + $0xba0] sm:$0xf]
    %v411 = vld [vmem:[%s1 + $0xba8] sm:$0xf]
    %v412 = vld [vmem:[%s1 + $0xbb0] sm:$0xf]
    %v413 = vld [vmem:[%s1 + $0xbb8] sm:$0xf]
    %v414 = vld [vmem:[%s1 + $0xbc0] sm:$0xf]
    %v415 = vld [vmem:[%s1 + $0xbc8] sm:$0xf]
    %v416 = vld [vmem:[%s1 + $0xbd0] sm:$0xf]
    %v417 = vld [vmem:[%s1 + $0xbd8] sm:$0xf]
    %v418 = vld [vmem:[%s2] sm:$0xff]
    %v419 = vld [vmem:[%s2 + $0x8] sm:$0x3]
    %v422 = vlaneseq
    %v423 = vshrl.u32 %v422, 7
    %v424 = vsub.s32 0, %v423
    %v425 = vrot.slane %v418, %v424
    %v426 = vlaneseq
    %v427 = vshrl.u32 %v426, 7
    %v428 = vsub.s32 1, %v427
    %v429 = vrot.slane %v418, %v428
    %v430 = vlaneseq
    %v431 = vshrl.u32 %v430, 7
    %v432 = vsub.s32 2, %v431
    %v433 = vrot.slane %v418, %v432
    %v434 = vlaneseq
    %v435 = vshrl.u32 %v434, 7
    %v436 = vsub.s32 3, %v435
    %v437 = vrot.slane %v418, %v436
    %v438 = vlaneseq
    %v439 = vshrl.u32 %v438, 7
    %v440 = vsub.s32 4, %v439
    %v441 = vrot.slane %v418, %v440
    %v442 = vlaneseq
    %v443 = vshrl.u32 %v442, 7
    %v444 = vsub.s32 5, %v443
    %v445 = vrot.slane %v418, %v444
    %v446 = vlaneseq
    %v447 = vshrl.u32 %v446, 7
    %v448 = vsub.s32 6, %v447
    %v449 = vrot.slane %v418, %v448
    %v450 = vlaneseq
    %v451 = vshrl.u32 %v450, 7
    %v452 = vsub.s32 7, %v451
    %v453 = vrot.slane %v418, %v452
    %v454 = vlaneseq
    %v455 = vshrl.u32 %v454, 7
    %v456 = vsub.s32 0, %v455
    %v457 = vrot.slane %v419, %v456
    %v458 = vlaneseq
    %v459 = vshrl.u32 %v458, 7
    %v460 = vsub.s32 1, %v459
    %v461 = vrot.slane %v419, %v460
    %vm472 = vcmask 359424
    %v474 = vsel %vm472, %v34, 0
    %v477 = vsel %vm472, %v37, 0
    %vm479 = vcmask 1043456
    %v481 = vsel %vm479, %v408, 0
    %v484 = vsel %vm479, %v409, 0
    %v487 = vsel %vm479, %v410, 0
    %v490 = vsel %vm479, %v411, 0
    %v493 = vsel %vm479, %v412, 0
    %v496 = vsel %vm479, %v413, 0
    %v499 = vsel %vm479, %v414, 0
    %v502 = vsel %vm479, %v415, 0
    %v505 = vsel %vm479, %v416, 0
    %v508 = vsel %vm479, %v417, 0
    %510 = vmatprep.subr.mxu0 %v39
    %511 = vmatpush1.msra.mxu0 %v38
    %512 = vmatprep.subr.mxu0 %v49
    %513 = vmatpush1.msra.mxu0 %v48
    %514 = vmatprep.subr.mxu0 %v59
    %515 = vmatpush1.msra.mxu0 %v58
    %516 = vmatprep.subr.mxu0 %v69
    %517 = vmatpush1.msra.mxu0 %v68
    %518 = vmatprep.subr.mxu0 %v79
    %519 = vmatpush1.msra.mxu0 %v78
    %520 = vmatprep.subr.mxu0 %v89
    %521 = vmatpush1.msra.mxu0 %v88
    %522 = vmatprep.subr.mxu0 %v99
    %523 = vmatpush1.msra.mxu0 %v98
    %524 = vmatprep.subr.mxu0 %v109
    %525 = vmatpush1.msra.mxu0 %v108
    %526 = vmatprep.subr.mxu0 %v119
    %527 = vmatpush1.msra.mxu0 %v118
    %528 = vmatprep.subr.mxu0 %v129
    %529 = vmatpush1.msra.mxu0 %v128
    %530 = vmatprep.subr.mxu0 %v139
    %531 = vmatpush1.msra.mxu0 %v138
    %532 = vmatprep.subr.mxu0 %v149
    %533 = vmatpush1.msra.mxu0 %v148
    %534 = vmatprep.subr.mxu0 %v159
    %535 = vmatpush1.msra.mxu0 %v158
    %536 = vmatprep.subr.mxu0 %v169
    %537 = vmatpush1.msra.mxu0 %v168
    %538 = vmatprep.subr.mxu0 %v179
    %539 = vmatpush1.msra.mxu0 %v178
    %540 = vmatprep.subr.mxu0 %v189
    %541 = vmatpush1.msra.mxu0 %v188
    %542 = vmatprep.subr.mxu0 %v199
    %543 = vmatpush1.msra.mxu0 %v198
    %544 = vmatprep.subr.mxu0 %v209
    %545 = vmatpush1.msra.mxu0 %v208
    %546 = vmatprep.subr.mxu0 %v219
    %547 = vmatpush1.msra.mxu0 %v218
    %548 = vmatprep.subr.mxu0 %v229
    %549 = vmatpush1.msra.mxu0 %v228
    %550 = vmatprep.subr.mxu0 %v239
    %551 = vmatpush1.msra.mxu0 %v238
    %552 = vmatprep.subr.mxu0 %v249
    %553 = vmatpush1.msra.mxu0 %v248
    %554 = vmatprep.subr.mxu0 %v259
    %555 = vmatpush1.msra.mxu0 %v258
    %556 = vmatprep.subr.mxu0 %v269
    %557 = vmatpush1.msra.mxu0 %v268
    %558 = vmatprep.subr.mxu0 %v279
    %559 = vmatpush1.msra.mxu0 %v278
    %560 = vmatprep.subr.mxu0 %v289
    %561 = vmatpush1.msra.mxu0 %v288
    %562 = vmatprep.subr.mxu0 %v299
    %563 = vmatpush1.msra.mxu0 %v298
    %564 = vmatprep.subr.mxu0 %v309
    %565 = vmatpush1.msra.mxu0 %v308
    %566 = vmatprep.subr.mxu0 %v319
    %567 = vmatpush1.msra.mxu0 %v318
    %568 = vmatprep.subr.mxu0 %v329
    %569 = vmatpush1.msra.mxu0 %v328
    %570 = vmatprep.subr.mxu0 %v339
    %571 = vmatpush1.msra.mxu0 %v338
    %572 = vmatprep.subr.mxu0 %v349
    %573 = vmatpush1.msra.mxu0 %v348
    %574 = vmatprep.mubr.f32.mxu0 %v33
    %575 = vmatmul.mubr.f32.gmra.mrb[0].mxu0 %v32
    %v576 = vpop.f32.mrb[0].mxu0
    %v577 = vadd.f32 %v425, %v576
    %v578 = vpop.f32.mrb[0].mxu0
    %v579 = vadd.f32 %v429, %v578
    %580 = vmatprep.mubr.f32.mxu0 %v36
    %581 = vmatmul.mubr.f32.gmra.mrb[0].mxu0 %v35
    %v582 = vpop.f32.mrb[0].mxu0
    %v583 = vadd.f32 %v425, %v582
    %v584 = vpop.f32.mrb[0].mxu0
    %v585 = vadd.f32 %v429, %v584
    %586 = vdwg.mxu0
    %587 = vmatprep.subr.mxu0 %v359
    %588 = vmatpush1.msra.mxu0 %v358
    %589 = vmatprep.subr.mxu0 %v369
    %590 = vmatpush1.msra.mxu0 %v368
    %591 = vmatprep.subr.mxu0 %v379
    %592 = vmatpush1.msra.mxu0 %v378
    %593 = vmatprep.subr.mxu0 %v389
    %594 = vmatpush1.msra.mxu0 %v388
    %595 = vmatprep.subr.mxu0 %v399
    %596 = vmatpush1.msra.mxu0 %v398
    %597 = vmatprep.subr.mxu0 %v484
    %598 = vmatpush1.msra.mxu0 %v481
    %599 = vmatprep.subr.mxu0 0.0
    %600 = vmatpush1.msra.mxu0 0.0
    %601 = vmatprep.subr.mxu0 0.0
    %602 = vmatpush1.msra.mxu0 0.0
    %603 = vmatprep.subr.mxu0 0.0
    %604 = vmatpush1.msra.mxu0 0.0
    %605 = vmatprep.subr.mxu0 0.0
    %606 = vmatpush1.msra.mxu0 0.0
    %607 = vmatprep.subr.mxu0 0.0
    %608 = vmatpush1.msra.mxu0 0.0
    %609 = vmatprep.subr.mxu0 0.0
    %610 = vmatpush1.msra.mxu0 0.0
    %611 = vmatprep.subr.mxu0 0.0
    %612 = vmatpush1.msra.mxu0 0.0
    %613 = vmatprep.subr.mxu0 0.0
    %614 = vmatpush1.msra.mxu0 0.0
    %615 = vmatprep.subr.mxu0 0.0
    %616 = vmatpush1.msra.mxu0 0.0
    %617 = vmatprep.subr.mxu0 0.0
    %618 = vmatpush1.msra.mxu0 0.0
    %619 = vmatprep.subr.mxu0 0.0
    %620 = vmatpush1.msra.mxu0 0.0
    %621 = vmatprep.subr.mxu0 0.0
    %622 = vmatpush1.msra.mxu0 0.0
    %623 = vmatprep.subr.mxu0 0.0
    %624 = vmatpush1.msra.mxu0 0.0
    %625 = vmatprep.subr.mxu0 0.0
    %626 = vmatpush1.msra.mxu0 0.0
    %627 = vmatprep.subr.mxu0 0.0
    %628 = vmatpush1.msra.mxu0 0.0
    %629 = vmatprep.subr.mxu0 0.0
    %630 = vmatpush1.msra.mxu0 0.0
    %631 = vmatprep.subr.mxu0 0.0
    %632 = vmatpush1.msra.mxu0 0.0
    %633 = vmatprep.subr.mxu0 0.0
    %634 = vmatpush1.msra.mxu0 0.0
    %635 = vmatprep.subr.mxu0 0.0
    %636 = vmatpush1.msra.mxu0 0.0
    %637 = vmatprep.subr.mxu0 0.0
    %638 = vmatpush1.msra.mxu0 0.0
    %639 = vmatprep.subr.mxu0 0.0
    %640 = vmatpush1.msra.mxu0 0.0
    %641 = vmatprep.subr.mxu0 0.0
    %642 = vmatpush1.msra.mxu0 0.0
    %643 = vmatprep.subr.mxu0 0.0
    %644 = vmatpush1.msra.mxu0 0.0
    %645 = vmatprep.subr.mxu0 0.0
    %646 = vmatpush1.msra.mxu0 0.0
    %647 = vmatprep.subr.mxu0 0.0
    %648 = vmatpush1.msra.mxu0 0.0
    %649 = vmatprep.subr.mxu0 0.0
    %650 = vmatpush1.msra.mxu0 0.0
    %651 = vmatprep.mubr.f32.mxu0 0.0
    %652 = vmatmul.mubr.f32.gmra.mrb[0].mxu0 %v474
    %v653 = vpop.f32.mrb[0].mxu0
    %v654 = vadd.f32 %v577, %v653
    %v655 = vpop.f32.mrb[0].mxu0
    %v656 = vadd.f32 %v579, %v655
    %657 = vmatprep.mubr.f32.mxu0 0.0
    %658 = vmatmul.mubr.f32.gmra.mrb[0].mxu0 %v477
    %v659 = vpop.f32.mrb[0].mxu0
    %v660 = vadd.f32 %v583, %v659
    %v661 = vpop.f32.mrb[0].mxu0
    %v662 = vadd.f32 %v585, %v661
    %663 = vdwg.mxu0
    %664 = vmatprep.subr.mxu0 %v41
    %665 = vmatpush1.msra.mxu0 %v40
    %666 = vmatprep.subr.mxu0 %v51
    %667 = vmatpush1.msra.mxu0 %v50
    %668 = vmatprep.subr.mxu0 %v61
    %669 = vmatpush1.msra.mxu0 %v60
    %670 = vmatprep.subr.mxu0 %v71
    %671 = vmatpush1.msra.mxu0 %v70
    %672 = vmatprep.subr.mxu0 %v81
    %673 = vmatpush1.msra.mxu0 %v80
    %674 = vmatprep.subr.mxu0 %v91
    %675 = vmatpush1.msra.mxu0 %v90
    %676 = vmatprep.subr.mxu0 %v101
    %677 = vmatpush1.msra.mxu0 %v100
    %678 = vmatprep.subr.mxu0 %v111
    %679 = vmatpush1.msra.mxu0 %v110
    %680 = vmatprep.subr.mxu0 %v121
    %681 = vmatpush1.msra.mxu0 %v120
    %682 = vmatprep.subr.mxu0 %v131
    %683 = vmatpush1.msra.mxu0 %v130
    %684 = vmatprep.subr.mxu0 %v141
    %685 = vmatpush1.msra.mxu0 %v140
    %686 = vmatprep.subr.mxu0 %v151
    %687 = vmatpush1.msra.mxu0 %v150
    %688 = vmatprep.subr.mxu0 %v161
    %689 = vmatpush1.msra.mxu0 %v160
    %690 = vmatprep.subr.mxu0 %v171
    %691 = vmatpush1.msra.mxu0 %v170
    %692 = vmatprep.subr.mxu0 %v181
    %693 = vmatpush1.msra.mxu0 %v180
    %694 = vmatprep.subr.mxu0 %v191
    %695 = vmatpush1.msra.mxu0 %v190
    %696 = vmatprep.subr.mxu0 %v201
    %697 = vmatpush1.msra.mxu0 %v200
    %698 = vmatprep.subr.mxu0 %v211
    %699 = vmatpush1.msra.mxu0 %v210
    %700 = vmatprep.subr.mxu0 %v221
    %701 = vmatpush1.msra.mxu0 %v220
    %702 = vmatprep.subr.mxu0 %v231
    %703 = vmatpush1.msra.mxu0 %v230
    %704 = vmatprep.subr.mxu0 %v241
    %705 = vmatpush1.msra.mxu0 %v240
    %706 = vmatprep.subr.mxu0 %v251
    %707 = vmatpush1.msra.mxu0 %v250
    %708 = vmatprep.subr.mxu0 %v261
    %709 = vmatpush1.msra.mxu0 %v260
    %710 = vmatprep.subr.mxu0 %v271
    %711 = vmatpush1.msra.mxu0 %v270
    %712 = vmatprep.subr.mxu0 %v281
    %713 = vmatpush1.msra.mxu0 %v280
    %714 = vmatprep.subr.mxu0 %v291
    %715 = vmatpush1.msra.mxu0 %v290
    %716 = vmatprep.subr.mxu0 %v301
    %717 = vmatpush1.msra.mxu0 %v300
    %718 = vmatprep.subr.mxu0 %v311
    %719 = vmatpush1.msra.mxu0 %v310
    %720 = vmatprep.subr.mxu0 %v321
    %721 = vmatpush1.msra.mxu0 %v320
    %722 = vmatprep.subr.mxu0 %v331
    %723 = vmatpush1.msra.mxu0 %v330
    %724 = vmatprep.subr.mxu0 %v341
    %725 = vmatpush1.msra.mxu0 %v340
    %726 = vmatprep.subr.mxu0 %v351
    %727 = vmatpush1.msra.mxu0 %v350
    %728 = vmatprep.mubr.f32.mxu0 %v33
    %729 = vmatmul.mubr.f32.gmra.mrb[0].mxu0 %v32
    %v730 = vpop.f32.mrb[0].mxu0
    %v731 = vadd.f32 %v433, %v730
    %v732 = vpop.f32.mrb[0].mxu0
    %v733 = vadd.f32 %v437, %v732
    %734 = vmatprep.mubr.f32.mxu0 %v36
    %735 = vmatmul.mubr.f32.gmra.mrb[0].mxu0 %v35
    %v736 = vpop.f32.mrb[0].mxu0
    %v737 = vadd.f32 %v433, %v736
    %v738 = vpop.f32.mrb[0].mxu0
    %v739 = vadd.f32 %v437, %v738
    %740 = vdwg.mxu0
    %741 = vmatprep.subr.mxu0 %v361
    %742 = vmatpush1.msra.mxu0 %v360
    %743 = vmatprep.subr.mxu0 %v371
    %744 = vmatpush1.msra.mxu0 %v370
    %745 = vmatprep.subr.mxu0 %v381
    %746 = vmatpush1.msra.mxu0 %v380
    %747 = vmatprep.subr.mxu0 %v391
    %748 = vmatpush1.msra.mxu0 %v390
    %749 = vmatprep.subr.mxu0 %v401
    %750 = vmatpush1.msra.mxu0 %v400
    %751 = vmatprep.subr.mxu0 %v490
    %752 = vmatpush1.msra.mxu0 %v487
    %753 = vmatprep.subr.mxu0 0.0
    %754 = vmatpush1.msra.mxu0 0.0
    %755 = vmatprep.subr.mxu0 0.0
    %756 = vmatpush1.msra.mxu0 0.0
    %757 = vmatprep.subr.mxu0 0.0
    %758 = vmatpush1.msra.mxu0 0.0
    %759 = vmatprep.subr.mxu0 0.0
    %760 = vmatpush1.msra.mxu0 0.0
    %761 = vmatprep.subr.mxu0 0.0
    %762 = vmatpush1.msra.mxu0 0.0
    %763 = vmatprep.subr.mxu0 0.0
    %764 = vmatpush1.msra.mxu0 0.0
    %765 = vmatprep.subr.mxu0 0.0
    %766 = vmatpush1.msra.mxu0 0.0
    %767 = vmatprep.subr.mxu0 0.0
    %768 = vmatpush1.msra.mxu0 0.0
    %769 = vmatprep.subr.mxu0 0.0
    %770 = vmatpush1.msra.mxu0 0.0
    %771 = vmatprep.subr.mxu0 0.0
    %772 = vmatpush1.msra.mxu0 0.0
    %773 = vmatprep.subr.mxu0 0.0
    %774 = vmatpush1.msra.mxu0 0.0
    %775 = vmatprep.subr.mxu0 0.0
    %776 = vmatpush1.msra.mxu0 0.0
    %777 = vmatprep.subr.mxu0 0.0
    %778 = vmatpush1.msra.mxu0 0.0
    %779 = vmatprep.subr.mxu0 0.0
    %780 = vmatpush1.msra.mxu0 0.0
    %781 = vmatprep.subr.mxu0 0.0
    %782 = vmatpush1.msra.mxu0 0.0
    %783 = vmatprep.subr.mxu0 0.0
    %784 = vmatpush1.msra.mxu0 0.0
    %785 = vmatprep.subr.mxu0 0.0
    %786 = vmatpush1.msra.mxu0 0.0
    %787 = vmatprep.subr.mxu0 0.0
    %788 = vmatpush1.msra.mxu0 0.0
    %789 = vmatprep.subr.mxu0 0.0
    %790 = vmatpush1.msra.mxu0 0.0
    %791 = vmatprep.subr.mxu0 0.0
    %792 = vmatpush1.msra.mxu0 0.0
    %793 = vmatprep.subr.mxu0 0.0
    %794 = vmatpush1.msra.mxu0 0.0
    %795 = vmatprep.subr.mxu0 0.0
    %796 = vmatpush1.msra.mxu0 0.0
    %797 = vmatprep.subr.mxu0 0.0
    %798 = vmatpush1.msra.mxu0 0.0
    %799 = vmatprep.subr.mxu0 0.0
    %800 = vmatpush1.msra.mxu0 0.0
    %801 = vmatprep.subr.mxu0 0.0
    %802 = vmatpush1.msra.mxu0 0.0
    %803 = vmatprep.subr.mxu0 0.0
    %804 = vmatpush1.msra.mxu0 0.0
    %805 = vmatprep.mubr.f32.mxu0 0.0
    %806 = vmatmul.mubr.f32.gmra.mrb[0].mxu0 %v474
    %v807 = vpop.f32.mrb[0].mxu0
    %v808 = vadd.f32 %v731, %v807
    %v809 = vpop.f32.mrb[0].mxu0
    %v810 = vadd.f32 %v733, %v809
    %811 = vmatprep.mubr.f32.mxu0 0.0
    %812 = vmatmul.mubr.f32.gmra.mrb[0].mxu0 %v477
    %v813 = vpop.f32.mrb[0].mxu0
    %v814 = vadd.f32 %v737, %v813
    %v815 = vpop.f32.mrb[0].mxu0
    %v816 = vadd.f32 %v739, %v815
    %817 = vdwg.mxu0
    %818 = vmatprep.subr.mxu0 %v43
    %819 = vmatpush1.msra.mxu0 %v42
    %820 = vmatprep.subr.mxu0 %v53
    %821 = vmatpush1.msra.mxu0 %v52
    %822 = vmatprep.subr.mxu0 %v63
    %823 = vmatpush1.msra.mxu0 %v62
    %824 = vmatprep.subr.mxu0 %v73
    %825 = vmatpush1.msra.mxu0 %v72
    %826 = vmatprep.subr.mxu0 %v83
    %827 = vmatpush1.msra.mxu0 %v82
    %828 = vmatprep.subr.mxu0 %v93
    %829 = vmatpush1.msra.mxu0 %v92
    %830 = vmatprep.subr.mxu0 %v103
    %831 = vmatpush1.msra.mxu0 %v102
    %832 = vmatprep.subr.mxu0 %v113
    %833 = vmatpush1.msra.mxu0 %v112
    %834 = vmatprep.subr.mxu0 %v123
    %835 = vmatpush1.msra.mxu0 %v122
    %836 = vmatprep.subr.mxu0 %v133
    %837 = vmatpush1.msra.mxu0 %v132
    %838 = vmatprep.subr.mxu0 %v143
    %839 = vmatpush1.msra.mxu0 %v142
    %840 = vmatprep.subr.mxu0 %v153
    %841 = vmatpush1.msra.mxu0 %v152
    %842 = vmatprep.subr.mxu0 %v163
    %843 = vmatpush1.msra.mxu0 %v162
    %844 = vmatprep.subr.mxu0 %v173
    %845 = vmatpush1.msra.mxu0 %v172
    %846 = vmatprep.subr.mxu0 %v183
    %847 = vmatpush1.msra.mxu0 %v182
    %848 = vmatprep.subr.mxu0 %v193
    %849 = vmatpush1.msra.mxu0 %v192
    %850 = vmatprep.subr.mxu0 %v203
    %851 = vmatpush1.msra.mxu0 %v202
    %852 = vmatprep.subr.mxu0 %v213
    %853 = vmatpush1.msra.mxu0 %v212
    %854 = vmatprep.subr.mxu0 %v223
    %855 = vmatpush1.msra.mxu0 %v222
    %856 = vmatprep.subr.mxu0 %v233
    %857 = vmatpush1.msra.mxu0 %v232
    %858 = vmatprep.subr.mxu0 %v243
    %859 = vmatpush1.msra.mxu0 %v242
    %860 = vmatprep.subr.mxu0 %v253
    %861 = vmatpush1.msra.mxu0 %v252
    %862 = vmatprep.subr.mxu0 %v263
    %863 = vmatpush1.msra.mxu0 %v262
    %864 = vmatprep.subr.mxu0 %v273
    %865 = vmatpush1.msra.mxu0 %v272
    %866 = vmatprep.subr.mxu0 %v283
    %867 = vmatpush1.msra.mxu0 %v282
    %868 = vmatprep.subr.mxu0 %v293
    %869 = vmatpush1.msra.mxu0 %v292
    %870 = vmatprep.subr.mxu0 %v303
    %871 = vmatpush1.msra.mxu0 %v302
    %872 = vmatprep.subr.mxu0 %v313
    %873 = vmatpush1.msra.mxu0 %v312
    %874 = vmatprep.subr.mxu0 %v323
    %875 = vmatpush1.msra.mxu0 %v322
    %876 = vmatprep.subr.mxu0 %v333
    %877 = vmatpush1.msra.mxu0 %v332
    %878 = vmatprep.subr.mxu0 %v343
    %879 = vmatpush1.msra.mxu0 %v342
    %880 = vmatprep.subr.mxu0 %v353
    %881 = vmatpush1.msra.mxu0 %v352
    %882 = vmatprep.mubr.f32.mxu0 %v33
    %883 = vmatmul.mubr.f32.gmra.mrb[0].mxu0 %v32
    %v884 = vpop.f32.mrb[0].mxu0
    %v885 = vadd.f32 %v441, %v884
    %v886 = vpop.f32.mrb[0].mxu0
    %v887 = vadd.f32 %v445, %v886
    %888 = vmatprep.mubr.f32.mxu0 %v36
    %889 = vmatmul.mubr.f32.gmra.mrb[0].mxu0 %v35
    %v890 = vpop.f32.mrb[0].mxu0
    %v891 = vadd.f32 %v441, %v890
    %v892 = vpop.f32.mrb[0].mxu0
    %v893 = vadd.f32 %v445, %v892
    %894 = vdwg.mxu0
    %895 = vmatprep.subr.mxu0 %v363
    %896 = vmatpush1.msra.mxu0 %v362
    %897 = vmatprep.subr.mxu0 %v373
    %898 = vmatpush1.msra.mxu0 %v372
    %899 = vmatprep.subr.mxu0 %v383
    %900 = vmatpush1.msra.mxu0 %v382
    %901 = vmatprep.subr.mxu0 %v393
    %902 = vmatpush1.msra.mxu0 %v392
    %903 = vmatprep.subr.mxu0 %v403
    %904 = vmatpush1.msra.mxu0 %v402
    %905 = vmatprep.subr.mxu0 %v496
    %906 = vmatpush1.msra.mxu0 %v493
    %907 = vmatprep.subr.mxu0 0.0
    %908 = vmatpush1.msra.mxu0 0.0
    %909 = vmatprep.subr.mxu0 0.0
    %910 = vmatpush1.msra.mxu0 0.0
    %911 = vmatprep.subr.mxu0 0.0
    %912 = vmatpush1.msra.mxu0 0.0
    %913 = vmatprep.subr.mxu0 0.0
    %914 = vmatpush1.msra.mxu0 0.0
    %915 = vmatprep.subr.mxu0 0.0
    %916 = vmatpush1.msra.mxu0 0.0
    %917 = vmatprep.subr.mxu0 0.0
    %918 = vmatpush1.msra.mxu0 0.0
    %919 = vmatprep.subr.mxu0 0.0
    %920 = vmatpush1.msra.mxu0 0.0
    %921 = vmatprep.subr.mxu0 0.0
    %922 = vmatpush1.msra.mxu0 0.0
    %923 = vmatprep.subr.mxu0 0.0
    %924 = vmatpush1.msra.mxu0 0.0
    %925 = vmatprep.subr.mxu0 0.0
    %926 = vmatpush1.msra.mxu0 0.0
    %927 = vmatprep.subr.mxu0 0.0
    %928 = vmatpush1.msra.mxu0 0.0
    %929 = vmatprep.subr.mxu0 0.0
    %930 = vmatpush1.msra.mxu0 0.0
    %931 = vmatprep.subr.mxu0 0.0
    %932 = vmatpush1.msra.mxu0 0.0
    %933 = vmatprep.subr.mxu0 0.0
    %934 = vmatpush1.msra.mxu0 0.0
    %935 = vmatprep.subr.mxu0 0.0
    %936 = vmatpush1.msra.mxu0 0.0
    %937 = vmatprep.subr.mxu0 0.0
    %938 = vmatpush1.msra.mxu0 0.0
    %939 = vmatprep.subr.mxu0 0.0
    %940 = vmatpush1.msra.mxu0 0.0
    %941 = vmatprep.subr.mxu0 0.0
    %942 = vmatpush1.msra.mxu0 0.0
    %943 = vmatprep.subr.mxu0 0.0
    %944 = vmatpush1.msra.mxu0 0.0
    %945 = vmatprep.subr.mxu0 0.0
    %946 = vmatpush1.msra.mxu0 0.0
    %947 = vmatprep.subr.mxu0 0.0
    %948 = vmatpush1.msra.mxu0 0.0
    %949 = vmatprep.subr.mxu0 0.0
    %950 = vmatpush1.msra.mxu0 0.0
    %951 = vmatprep.subr.mxu0 0.0
    %952 = vmatpush1.msra.mxu0 0.0
    %953 = vmatprep.subr.mxu0 0.0
    %954 = vmatpush1.msra.mxu0 0.0
    %955 = vmatprep.subr.mxu0 0.0
    %956 = vmatpush1.msra.mxu0 0.0
    %957 = vmatprep.subr.mxu0 0.0
    %958 = vmatpush1.msra.mxu0 0.0
    %959 = vmatprep.mubr.f32.mxu0 0.0
    %960 = vmatmul.mubr.f32.gmra.mrb[0].mxu0 %v474
    %v961 = vpop.f32.mrb[0].mxu0
    %v962 = vadd.f32 %v885, %v961
    %v963 = vpop.f32.mrb[0].mxu0
    %v964 = vadd.f32 %v887, %v963
    %965 = vmatprep.mubr.f32.mxu0 0.0
    %966 = vmatmul.mubr.f32.gmra.mrb[0].mxu0 %v477
    %v967 = vpop.f32.mrb[0].mxu0
    %v968 = vadd.f32 %v891, %v967
    %v969 = vpop.f32.mrb[0].mxu0
    %v970 = vadd.f32 %v893, %v969
    %971 = vdwg.mxu0
    %972 = vmatprep.subr.mxu0 %v45
    %973 = vmatpush1.msra.mxu0 %v44
    %974 = vmatprep.subr.mxu0 %v55
    %975 = vmatpush1.msra.mxu0 %v54
    %976 = vmatprep.subr.mxu0 %v65
    %977 = vmatpush1.msra.mxu0 %v64
    %978 = vmatprep.subr.mxu0 %v75
    %979 = vmatpush1.msra.mxu0 %v74
    %980 = vmatprep.subr.mxu0 %v85
    %981 = vmatpush1.msra.mxu0 %v84
    %982 = vmatprep.subr.mxu0 %v95
    %983 = vmatpush1.msra.mxu0 %v94
    %984 = vmatprep.subr.mxu0 %v105
    %985 = vmatpush1.msra.mxu0 %v104
    %986 = vmatprep.subr.mxu0 %v115
    %987 = vmatpush1.msra.mxu0 %v114
    %988 = vmatprep.subr.mxu0 %v125
    %989 = vmatpush1.msra.mxu0 %v124
    %990 = vmatprep.subr.mxu0 %v135
    %991 = vmatpush1.msra.mxu0 %v134
    %992 = vmatprep.subr.mxu0 %v145
    %993 = vmatpush1.msra.mxu0 %v144
    %994 = vmatprep.subr.mxu0 %v155
    %995 = vmatpush1.msra.mxu0 %v154
    %996 = vmatprep.subr.mxu0 %v165
    %997 = vmatpush1.msra.mxu0 %v164
    %998 = vmatprep.subr.mxu0 %v175
    %999 = vmatpush1.msra.mxu0 %v174
    %1000 = vmatprep.subr.mxu0 %v185
    %1001 = vmatpush1.msra.mxu0 %v184
    %1002 = vmatprep.subr.mxu0 %v195
    %1003 = vmatpush1.msra.mxu0 %v194
    %1004 = vmatprep.subr.mxu0 %v205
    %1005 = vmatpush1.msra.mxu0 %v204
    %1006 = vmatprep.subr.mxu0 %v215
    %1007 = vmatpush1.msra.mxu0 %v214
    %1008 = vmatprep.subr.mxu0 %v225
    %1009 = vmatpush1.msra.mxu0 %v224
    %1010 = vmatprep.subr.mxu0 %v235
    %1011 = vmatpush1.msra.mxu0 %v234
    %1012 = vmatprep.subr.mxu0 %v245
    %1013 = vmatpush1.msra.mxu0 %v244
    %1014 = vmatprep.subr.mxu0 %v255
    %1015 = vmatpush1.msra.mxu0 %v254
    %1016 = vmatprep.subr.mxu0 %v265
    %1017 = vmatpush1.msra.mxu0 %v264
    %1018 = vmatprep.subr.mxu0 %v275
    %1019 = vmatpush1.msra.mxu0 %v274
    %1020 = vmatprep.subr.mxu0 %v285
    %1021 = vmatpush1.msra.mxu0 %v284
    %1022 = vmatprep.subr.mxu0 %v295
    %1023 = vmatpush1.msra.mxu0 %v294
    %1024 = vmatprep.subr.mxu0 %v305
    %1025 = vmatpush1.msra.mxu0 %v304
    %1026 = vmatprep.subr.mxu0 %v315
    %1027 = vmatpush1.msra.mxu0 %v314
    %1028 = vmatprep.subr.mxu0 %v325
    %1029 = vmatpush1.msra.mxu0 %v324
    %1030 = vmatprep.subr.mxu0 %v335
    %1031 = vmatpush1.msra.mxu0 %v334
    %1032 = vmatprep.subr.mxu0 %v345
    %1033 = vmatpush1.msra.mxu0 %v344
    %1034 = vmatprep.subr.mxu0 %v355
    %1035 = vmatpush1.msra.mxu0 %v354
    %1036 = vmatprep.mubr.f32.mxu0 %v33
    %1037 = vmatmul.mubr.f32.gmra.mrb[0].mxu0 %v32
    %v1038 = vpop.f32.mrb[0].mxu0
    %v1039 = vadd.f32 %v449, %v1038
    %v1040 = vpop.f32.mrb[0].mxu0
    %v1041 = vadd.f32 %v453, %v1040
    %1042 = vmatprep.mubr.f32.mxu0 %v36
    %1043 = vmatmul.mubr.f32.gmra.mrb[0].mxu0 %v35
    %v1044 = vpop.f32.mrb[0].mxu0
    %v1045 = vadd.f32 %v449, %v1044
    %v1046 = vpop.f32.mrb[0].mxu0
    %v1047 = vadd.f32 %v453, %v1046
    %1048 = vdwg.mxu0
    %1049 = vmatprep.subr.mxu0 %v365
    %1050 = vmatpush1.msra.mxu0 %v364
    %1051 = vmatprep.subr.mxu0 %v375
    %1052 = vmatpush1.msra.mxu0 %v374
    %1053 = vmatprep.subr.mxu0 %v385
    %1054 = vmatpush1.msra.mxu0 %v384
    %1055 = vmatprep.subr.mxu0 %v395
    %1056 = vmatpush1.msra.mxu0 %v394
    %1057 = vmatprep.subr.mxu0 %v405
    %1058 = vmatpush1.msra.mxu0 %v404
    %1059 = vmatprep.subr.mxu0 %v502
    %1060 = vmatpush1.msra.mxu0 %v499
    %1061 = vmatprep.subr.mxu0 0.0
    %1062 = vmatpush1.msra.mxu0 0.0
    %1063 = vmatprep.subr.mxu0 0.0
    %1064 = vmatpush1.msra.mxu0 0.0
    %1065 = vmatprep.subr.mxu0 0.0
    %1066 = vmatpush1.msra.mxu0 0.0
    %1067 = vmatprep.subr.mxu0 0.0
    %1068 = vmatpush1.msra.mxu0 0.0
    %1069 = vmatprep.subr.mxu0 0.0
    %1070 = vmatpush1.msra.mxu0 0.0
    %1071 = vmatprep.subr.mxu0 0.0
    %1072 = vmatpush1.msra.mxu0 0.0
    %1073 = vmatprep.subr.mxu0 0.0
    %1074 = vmatpush1.msra.mxu0 0.0
    %1075 = vmatprep.subr.mxu0 0.0
    %1076 = vmatpush1.msra.mxu0 0.0
    %1077 = vmatprep.subr.mxu0 0.0
    %1078 = vmatpush1.msra.mxu0 0.0
    %1079 = vmatprep.subr.mxu0 0.0
    %1080 = vmatpush1.msra.mxu0 0.0
    %1081 = vmatprep.subr.mxu0 0.0
    %1082 = vmatpush1.msra.mxu0 0.0
    %1083 = vmatprep.subr.mxu0 0.0
    %1084 = vmatpush1.msra.mxu0 0.0
    %1085 = vmatprep.subr.mxu0 0.0
    %1086 = vmatpush1.msra.mxu0 0.0
    %1087 = vmatprep.subr.mxu0 0.0
    %1088 = vmatpush1.msra.mxu0 0.0
    %1089 = vmatprep.subr.mxu0 0.0
    %1090 = vmatpush1.msra.mxu0 0.0
    %1091 = vmatprep.subr.mxu0 0.0
    %1092 = vmatpush1.msra.mxu0 0.0
    %1093 = vmatprep.subr.mxu0 0.0
    %1094 = vmatpush1.msra.mxu0 0.0
    %1095 = vmatprep.subr.mxu0 0.0
    %1096 = vmatpush1.msra.mxu0 0.0
    %1097 = vmatprep.subr.mxu0 0.0
    %1098 = vmatpush1.msra.mxu0 0.0
    %1099 = vmatprep.subr.mxu0 0.0
    %1100 = vmatpush1.msra.mxu0 0.0
    %1101 = vmatprep.subr.mxu0 0.0
    %1102 = vmatpush1.msra.mxu0 0.0
    %1103 = vmatprep.subr.mxu0 0.0
    %1104 = vmatpush1.msra.mxu0 0.0
    %1105 = vmatprep.subr.mxu0 0.0
    %1106 = vmatpush1.msra.mxu0 0.0
    %1107 = vmatprep.subr.mxu0 0.0
    %1108 = vmatpush1.msra.mxu0 0.0
    %1109 = vmatprep.subr.mxu0 0.0
    %1110 = vmatpush1.msra.mxu0 0.0
    %1111 = vmatprep.subr.mxu0 0.0
    %1112 = vmatpush1.msra.mxu0 0.0
    %1113 = vmatprep.mubr.f32.mxu0 0.0
    %1114 = vmatmul.mubr.f32.gmra.mrb[0].mxu0 %v474
    %v1115 = vpop.f32.mrb[0].mxu0
    %v1116 = vadd.f32 %v1039, %v1115
    %v1117 = vpop.f32.mrb[0].mxu0
    %v1118 = vadd.f32 %v1041, %v1117
    %1119 = vmatprep.mubr.f32.mxu0 0.0
    %1120 = vmatmul.mubr.f32.gmra.mrb[0].mxu0 %v477
    %v1121 = vpop.f32.mrb[0].mxu0
    %v1122 = vadd.f32 %v1045, %v1121
    %v1123 = vpop.f32.mrb[0].mxu0
    %v1124 = vadd.f32 %v1047, %v1123
    %1125 = vdwg.mxu0
    %1126 = vmatprep.subr.mxu0 %v47
    %1127 = vmatpush1.msra.mxu0 %v46
    %1128 = vmatprep.subr.mxu0 %v57
    %1129 = vmatpush1.msra.mxu0 %v56
    %1130 = vmatprep.subr.mxu0 %v67
    %1131 = vmatpush1.msra.mxu0 %v66
    %1132 = vmatprep.subr.mxu0 %v77
    %1133 = vmatpush1.msra.mxu0 %v76
    %1134 = vmatprep.subr.mxu0 %v87
    %1135 = vmatpush1.msra.mxu0 %v86
    %1136 = vmatprep.subr.mxu0 %v97
    %1137 = vmatpush1.msra.mxu0 %v96
    %1138 = vmatprep.subr.mxu0 %v107
    %1139 = vmatpush1.msra.mxu0 %v106
    %1140 = vmatprep.subr.mxu0 %v117
    %1141 = vmatpush1.msra.mxu0 %v116
    %1142 = vmatprep.subr.mxu0 %v127
    %1143 = vmatpush1.msra.mxu0 %v126
    %1144 = vmatprep.subr.mxu0 %v137
    %1145 = vmatpush1.msra.mxu0 %v136
    %1146 = vmatprep.subr.mxu0 %v147
    %1147 = vmatpush1.msra.mxu0 %v146
    %1148 = vmatprep.subr.mxu0 %v157
    %1149 = vmatpush1.msra.mxu0 %v156
    %1150 = vmatprep.subr.mxu0 %v167
    %1151 = vmatpush1.msra.mxu0 %v166
    %1152 = vmatprep.subr.mxu0 %v177
    %1153 = vmatpush1.msra.mxu0 %v176
    %1154 = vmatprep.subr.mxu0 %v187
    %1155 = vmatpush1.msra.mxu0 %v186
    %1156 = vmatprep.subr.mxu0 %v197
    %1157 = vmatpush1.msra.mxu0 %v196
    %1158 = vmatprep.subr.mxu0 %v207
    %1159 = vmatpush1.msra.mxu0 %v206
    %1160 = vmatprep.subr.mxu0 %v217
    %1161 = vmatpush1.msra.mxu0 %v216
    %1162 = vmatprep.subr.mxu0 %v227
    %1163 = vmatpush1.msra.mxu0 %v226
    %1164 = vmatprep.subr.mxu0 %v237
    %1165 = vmatpush1.msra.mxu0 %v236
    %1166 = vmatprep.subr.mxu0 %v247
    %1167 = vmatpush1.msra.mxu0 %v246
    %1168 = vmatprep.subr.mxu0 %v257
    %1169 = vmatpush1.msra.mxu0 %v256
    %1170 = vmatprep.subr.mxu0 %v267
    %1171 = vmatpush1.msra.mxu0 %v266
    %1172 = vmatprep.subr.mxu0 %v277
    %1173 = vmatpush1.msra.mxu0 %v276
    %1174 = vmatprep.subr.mxu0 %v287
    %1175 = vmatpush1.msra.mxu0 %v286
    %1176 = vmatprep.subr.mxu0 %v297
    %1177 = vmatpush1.msra.mxu0 %v296
    %1178 = vmatprep.subr.mxu0 %v307
    %1179 = vmatpush1.msra.mxu0 %v306
    %1180 = vmatprep.subr.mxu0 %v317
    %1181 = vmatpush1.msra.mxu0 %v316
    %1182 = vmatprep.subr.mxu0 %v327
    %1183 = vmatpush1.msra.mxu0 %v326
    %1184 = vmatprep.subr.mxu0 %v337
    %1185 = vmatpush1.msra.mxu0 %v336
    %1186 = vmatprep.subr.mxu0 %v347
    %1187 = vmatpush1.msra.mxu0 %v346
    %1188 = vmatprep.subr.mxu0 %v357
    %1189 = vmatpush1.msra.mxu0 %v356
    %1190 = vmatprep.mubr.f32.mxu0 %v33
    %1191 = vmatmul.mubr.f32.gmra.mrb[0].mxu0 %v32
    %v1192 = vpop.f32.mrb[0].mxu0
    %v1193 = vadd.f32 %v457, %v1192
    %v1194 = vpop.f32.mrb[0].mxu0
    %v1195 = vadd.f32 %v461, %v1194
    %1196 = vmatprep.mubr.f32.mxu0 %v36
    %1197 = vmatmul.mubr.f32.gmra.mrb[0].mxu0 %v35
    %v1198 = vpop.f32.mrb[0].mxu0
    %v1199 = vadd.f32 %v457, %v1198
    %v1200 = vpop.f32.mrb[0].mxu0
    %v1201 = vadd.f32 %v461, %v1200
    %1202 = vdwg.mxu0
    %1203 = vmatprep.subr.mxu0 %v367
    %1204 = vmatpush1.msra.mxu0 %v366
    %1205 = vmatprep.subr.mxu0 %v377
    %1206 = vmatpush1.msra.mxu0 %v376
    %1207 = vmatprep.subr.mxu0 %v387
    %1208 = vmatpush1.msra.mxu0 %v386
    %1209 = vmatprep.subr.mxu0 %v397
    %1210 = vmatpush1.msra.mxu0 %v396
    %1211 = vmatprep.subr.mxu0 %v407
    %1212 = vmatpush1.msra.mxu0 %v406
    %1213 = vmatprep.subr.mxu0 %v508
    %1214 = vmatpush1.msra.mxu0 %v505
    %1215 = vmatprep.subr.mxu0 0.0
    %1216 = vmatpush1.msra.mxu0 0.0
    %1217 = vmatprep.subr.mxu0 0.0
    %1218 = vmatpush1.msra.mxu0 0.0
    %1219 = vmatprep.subr.mxu0 0.0
    %1220 = vmatpush1.msra.mxu0 0.0
    %1221 = vmatprep.subr.mxu0 0.0
    %1222 = vmatpush1.msra.mxu0 0.0
    %1223 = vmatprep.subr.mxu0 0.0
    %1224 = vmatpush1.msra.mxu0 0.0
    %1225 = vmatprep.subr.mxu0 0.0
    %1226 = vmatpush1.msra.mxu0 0.0
    %1227 = vmatprep.subr.mxu0 0.0
    %1228 = vmatpush1.msra.mxu0 0.0
    %1229 = vmatprep.subr.mxu0 0.0
    %1230 = vmatpush1.msra.mxu0 0.0
    %1231 = vmatprep.subr.mxu0 0.0
    %1232 = vmatpush1.msra.mxu0 0.0
    %1233 = vmatprep.subr.mxu0 0.0
    %1234 = vmatpush1.msra.mxu0 0.0
    %1235 = vmatprep.subr.mxu0 0.0
    %1236 = vmatpush1.msra.mxu0 0.0
    %1237 = vmatprep.subr.mxu0 0.0
    %1238 = vmatpush1.msra.mxu0 0.0
    %1239 = vmatprep.subr.mxu0 0.0
    %1240 = vmatpush1.msra.mxu0 0.0
    %1241 = vmatprep.subr.mxu0 0.0
    %1242 = vmatpush1.msra.mxu0 0.0
    %1243 = vmatprep.subr.mxu0 0.0
    %1244 = vmatpush1.msra.mxu0 0.0
    %1245 = vmatprep.subr.mxu0 0.0
    %1246 = vmatpush1.msra.mxu0 0.0
    %1247 = vmatprep.subr.mxu0 0.0
    %1248 = vmatpush1.msra.mxu0 0.0
    %1249 = vmatprep.subr.mxu0 0.0
    %1250 = vmatpush1.msra.mxu0 0.0
    %1251 = vmatprep.subr.mxu0 0.0
    %1252 = vmatpush1.msra.mxu0 0.0
    %1253 = vmatprep.subr.mxu0 0.0
    %1254 = vmatpush1.msra.mxu0 0.0
    %1255 = vmatprep.subr.mxu0 0.0
    %1256 = vmatpush1.msra.mxu0 0.0
    %1257 = vmatprep.subr.mxu0 0.0
    %1258 = vmatpush1.msra.mxu0 0.0
    %1259 = vmatprep.subr.mxu0 0.0
    %1260 = vmatpush1.msra.mxu0 0.0
    %1261 = vmatprep.subr.mxu0 0.0
    %1262 = vmatpush1.msra.mxu0 0.0
    %1263 = vmatprep.subr.mxu0 0.0
    %1264 = vmatpush1.msra.mxu0 0.0
    %1265 = vmatprep.subr.mxu0 0.0
    %1266 = vmatpush1.msra.mxu0 0.0
    %1267 = vmatprep.mubr.f32.mxu0 0.0
    %1268 = vmatmul.mubr.f32.gmra.mrb[0].mxu0 %v474
    %v1269 = vpop.f32.mrb[0].mxu0
    %v1270 = vadd.f32 %v1193, %v1269
    %v1271 = vpop.f32.mrb[0].mxu0
    %v1272 = vadd.f32 %v1195, %v1271
    %1273 = vmatprep.mubr.f32.mxu0 0.0
    %1274 = vmatmul.mubr.f32.gmra.mrb[0].mxu0 %v477
    %v1275 = vpop.f32.mrb[0].mxu0
    %v1276 = vadd.f32 %v1199, %v1275
    %v1277 = vpop.f32.mrb[0].mxu0
    %v1278 = vadd.f32 %v1201, %v1277
    %1279 = vdwg.mxu0
    %v1280 = vmax.f32 %v654, 0.0
    %v1281 = vmax.f32 %v656, 0.0
    %v1282 = vmax.f32 %v808, 0.0
    %v1283 = vmax.f32 %v810, 0.0
    %v1284 = vmax.f32 %v962, 0.0
    %v1285 = vmax.f32 %v964, 0.0
    %v1286 = vmax.f32 %v1116, 0.0
    %v1287 = vmax.f32 %v1118, 0.0
    %v1288 = vmax.f32 %v1270, 0.0
    %v1289 = vmax.f32 %v1272, 0.0
    %v1290 = vmax.f32 %v660, 0.0
    %v1291 = vmax.f32 %v662, 0.0
    %v1292 = vmax.f32 %v814, 0.0
    %v1293 = vmax.f32 %v816, 0.0
    %v1294 = vmax.f32 %v968, 0.0
    %v1295 = vmax.f32 %v970, 0.0
    %v1296 = vmax.f32 %v1122, 0.0
    %v1297 = vmax.f32 %v1124, 0.0
    %v1298 = vmax.f32 %v1276, 0.0
    %v1299 = vmax.f32 %v1278, 0.0
    %v1300 = vld [vmem:[#allocation2] sm:$0xff]
    %v1301 = vld [vmem:[#allocation2 + $0x8] sm:$0xff]
    %v1302 = vld [vmem:[#allocation2 + $0x10] sm:$0xff]
    %v1303 = vld [vmem:[#allocation2 + $0x18] sm:$0xff]
    %v1304 = vld [vmem:[#allocation2 + $0x20] sm:$0xff]
    %v1305 = vld [vmem:[#allocation2 + $0x28] sm:$0xff]
    %v1306 = vld [vmem:[%s3] sm:$0xff]
    %v1307 = vld [vmem:[%s3 + $0x8] sm:$0xff]
    %v1308 = vld [vmem:[%s3 + $0x10] sm:$0xff]
    %v1309 = vld [vmem:[%s3 + $0x18] sm:$0xff]
    %v1310 = vld [vmem:[%s3 + $0x20] sm:$0xff]
    %v1311 = vld [vmem:[%s3 + $0x28] sm:$0xff]
    %v1312 = vld [vmem:[%s3 + $0x30] sm:$0xff]
    %v1313 = vld [vmem:[%s3 + $0x38] sm:$0xff]
    %v1314 = vld [vmem:[%s3 + $0x40] sm:$0xff]
    %v1315 = vld [vmem:[%s3 + $0x48] sm:$0xff]
    %v1316 = vld [vmem:[%s3 + $0x50] sm:$0xff]
    %v1317 = vld [vmem:[%s3 + $0x58] sm:$0xff]
    %v1318 = vld [vmem:[%s3 + $0x60] sm:$0xff]
    %v1319 = vld [vmem:[%s3 + $0x68] sm:$0xff]
    %v1320 = vld [vmem:[%s3 + $0x70] sm:$0xff]
    %v1321 = vld [vmem:[%s3 + $0x78] sm:$0xff]
    %v1322 = vld [vmem:[%s3 + $0x80] sm:$0xff]
    %v1323 = vld [vmem:[%s3 + $0x88] sm:$0xff]
    %v1324 = vld [vmem:[%s3 + $0x90] sm:$0xff]
    %v1325 = vld [vmem:[%s3 + $0x98] sm:$0xff]
    %v1326 = vld [vmem:[%s3 + $0xa0] sm:$0xff]
    %v1327 = vld [vmem:[%s3 + $0xa8] sm:$0xff]
    %v1328 = vld [vmem:[%s3 + $0xb0] sm:$0xff]
    %v1329 = vld [vmem:[%s3 + $0xb8] sm:$0xff]
    %v1330 = vld [vmem:[%s3 + $0xc0] sm:$0xff]
    %v1331 = vld [vmem:[%s3 + $0xc8] sm:$0xff]
    %v1332 = vld [vmem:[%s3 + $0xd0] sm:$0xff]
    %v1333 = vld [vmem:[%s3 + $0xd8] sm:$0xff]
    %v1334 = vld [vmem:[%s3 + $0xe0] sm:$0xff]
    %v1335 = vld [vmem:[%s3 + $0xe8] sm:$0xff]
    %v1336 = vld [vmem:[%s3 + $0xf0] sm:$0xff]
    %v1337 = vld [vmem:[%s3 + $0xf8] sm:$0xff]
    %v1338 = vld [vmem:[%s3 + $0x100] sm:$0xff]
    %v1339 = vld [vmem:[%s3 + $0x108] sm:$0xff]
    %v1340 = vld [vmem:[%s3 + $0x110] sm:$0xff]
    %v1341 = vld [vmem:[%s3 + $0x118] sm:$0xff]
    %v1342 = vld [vmem:[%s3 + $0x120] sm:$0xff]
    %v1343 = vld [vmem:[%s3 + $0x128] sm:$0xff]
    %v1344 = vld [vmem:[%s3 + $0x130] sm:$0xff]
    %v1345 = vld [vmem:[%s3 + $0x138] sm:$0xff]
    %v1346 = vld [vmem:[%s3 + $0x140] sm:$0xff]
    %v1347 = vld [vmem:[%s3 + $0x148] sm:$0xff]
    %v1348 = vld [vmem:[%s3 + $0x150] sm:$0xff]
    %v1349 = vld [vmem:[%s3 + $0x158] sm:$0xff]
    %v1350 = vld [vmem:[%s3 + $0x160] sm:$0xff]
    %v1351 = vld [vmem:[%s3 + $0x168] sm:$0xff]
    %v1352 = vld [vmem:[%s3 + $0x170] sm:$0xff]
    %v1353 = vld [vmem:[%s3 + $0x178] sm:$0xff]
    %v1354 = vld [vmem:[%s3 + $0x180] sm:$0xff]
    %v1355 = vld [vmem:[%s3 + $0x188] sm:$0xff]
    %v1356 = vld [vmem:[%s3 + $0x190] sm:$0xff]
    %v1357 = vld [vmem:[%s3 + $0x198] sm:$0xff]
    %v1358 = vld [vmem:[%s3 + $0x1a0] sm:$0xff]
    %v1359 = vld [vmem:[%s3 + $0x1a8] sm:$0xff]
    %v1360 = vld [vmem:[%s3 + $0x1b0] sm:$0xff]
    %v1361 = vld [vmem:[%s3 + $0x1b8] sm:$0xff]
    %v1362 = vld [vmem:[%s3 + $0x1c0] sm:$0xff]
    %v1363 = vld [vmem:[%s3 + $0x1c8] sm:$0xff]
    %v1364 = vld [vmem:[%s3 + $0x1d0] sm:$0xff]
    %v1365 = vld [vmem:[%s3 + $0x1d8] sm:$0xff]
    %v1366 = vld [vmem:[%s3 + $0x1e0] sm:$0xff]
    %v1367 = vld [vmem:[%s3 + $0x1e8] sm:$0xff]
    %v1368 = vld [vmem:[%s3 + $0x1f0] sm:$0xff]
    %v1369 = vld [vmem:[%s3 + $0x1f8] sm:$0xff]
    %v1370 = vld [vmem:[%s3 + $0x200] sm:$0xff]
    %v1371 = vld [vmem:[%s3 + $0x208] sm:$0xff]
    %v1372 = vld [vmem:[%s3 + $0x210] sm:$0xff]
    %v1373 = vld [vmem:[%s3 + $0x218] sm:$0xff]
    %v1374 = vld [vmem:[%s3 + $0x220] sm:$0xff]
    %v1375 = vld [vmem:[%s3 + $0x228] sm:$0xff]
    %v1376 = vld [vmem:[%s3 + $0x230] sm:$0xff]
    %v1377 = vld [vmem:[%s3 + $0x238] sm:$0xff]
    %v1378 = vld [vmem:[%s3 + $0x240] sm:$0xff]
    %v1379 = vld [vmem:[%s3 + $0x248] sm:$0xff]
    %v1380 = vld [vmem:[%s3 + $0x250] sm:$0xff]
    %v1381 = vld [vmem:[%s3 + $0x258] sm:$0xff]
    %v1382 = vld [vmem:[%s3 + $0x260] sm:$0xff]
    %v1383 = vld [vmem:[%s3 + $0x268] sm:$0xff]
    %v1384 = vld [vmem:[%s3 + $0x270] sm:$0xff]
    %v1385 = vld [vmem:[%s3 + $0x278] sm:$0xff]
    %v1386 = vld [vmem:[%s3 + $0x280] sm:$0xff]
    %v1387 = vld [vmem:[%s3 + $0x288] sm:$0xff]
    %v1388 = vld [vmem:[%s3 + $0x290] sm:$0xff]
    %v1389 = vld [vmem:[%s3 + $0x298] sm:$0xff]
    %v1390 = vld [vmem:[%s3 + $0x2a0] sm:$0xff]
    %v1391 = vld [vmem:[%s3 + $0x2a8] sm:$0xff]
    %v1392 = vld [vmem:[%s3 + $0x2b0] sm:$0xff]
    %v1393 = vld [vmem:[%s3 + $0x2b8] sm:$0xff]
    %v1394 = vld [vmem:[%s3 + $0x2c0] sm:$0xff]
    %v1395 = vld [vmem:[%s3 + $0x2c8] sm:$0xff]
    %v1396 = vld [vmem:[%s3 + $0x2d0] sm:$0xff]
    %v1397 = vld [vmem:[%s3 + $0x2d8] sm:$0xff]
    %v1398 = vld [vmem:[%s3 + $0x2e0] sm:$0xff]
    %v1399 = vld [vmem:[%s3 + $0x2e8] sm:$0xff]
    %v1400 = vld [vmem:[%s3 + $0x2f0] sm:$0xff]
    %v1401 = vld [vmem:[%s3 + $0x2f8] sm:$0xff]
    %v1402 = vld [vmem:[%s3 + $0x300] sm:$0xff]
    %v1403 = vld [vmem:[%s3 + $0x308] sm:$0xff]
    %v1404 = vld [vmem:[%s3 + $0x310] sm:$0xff]
    %v1405 = vld [vmem:[%s3 + $0x318] sm:$0xff]
    %v1406 = vld [vmem:[%s3 + $0x320] sm:$0xff]
    %v1407 = vld [vmem:[%s3 + $0x328] sm:$0xff]
    %v1408 = vld [vmem:[%s3 + $0x330] sm:$0xff]
    %v1409 = vld [vmem:[%s3 + $0x338] sm:$0xff]
    %v1410 = vld [vmem:[%s3 + $0x340] sm:$0xff]
    %v1411 = vld [vmem:[%s3 + $0x348] sm:$0xff]
    %v1412 = vld [vmem:[%s3 + $0x350] sm:$0xff]
    %v1413 = vld [vmem:[%s3 + $0x358] sm:$0xff]
    %v1414 = vld [vmem:[%s3 + $0x360] sm:$0xff]
    %v1415 = vld [vmem:[%s3 + $0x368] sm:$0xff]
    %v1416 = vld [vmem:[%s3 + $0x370] sm:$0xff]
    %v1417 = vld [vmem:[%s3 + $0x378] sm:$0xff]
    %v1418 = vld [vmem:[%s3 + $0x380] sm:$0xff]
    %v1419 = vld [vmem:[%s3 + $0x388] sm:$0xff]
    %v1420 = vld [vmem:[%s3 + $0x390] sm:$0xff]
    %v1421 = vld [vmem:[%s3 + $0x398] sm:$0xff]
    %v1422 = vld [vmem:[%s3 + $0x3a0] sm:$0xff]
    %v1423 = vld [vmem:[%s3 + $0x3a8] sm:$0xff]
    %v1424 = vld [vmem:[%s3 + $0x3b0] sm:$0xff]
    %v1425 = vld [vmem:[%s3 + $0x3b8] sm:$0xff]
    %v1426 = vld [vmem:[%s3 + $0x3c0] sm:$0xff]
    %v1427 = vld [vmem:[%s3 + $0x3c8] sm:$0xff]
    %v1428 = vld [vmem:[%s3 + $0x3d0] sm:$0xff]
    %v1429 = vld [vmem:[%s3 + $0x3d8] sm:$0xff]
    %v1430 = vld [vmem:[%s3 + $0x3e0] sm:$0xff]
    %v1431 = vld [vmem:[%s3 + $0x3e8] sm:$0xff]
    %v1432 = vld [vmem:[%s3 + $0x3f0] sm:$0xff]
    %v1433 = vld [vmem:[%s3 + $0x3f8] sm:$0xff]
    %v1434 = vld [vmem:[%s3 + $0x400] sm:$0xff]
    %v1435 = vld [vmem:[%s3 + $0x408] sm:$0xff]
    %v1436 = vld [vmem:[%s3 + $0x410] sm:$0xff]
    %v1437 = vld [vmem:[%s3 + $0x418] sm:$0xff]
    %v1438 = vld [vmem:[%s3 + $0x420] sm:$0xff]
    %v1439 = vld [vmem:[%s3 + $0x428] sm:$0xff]
    %v1440 = vld [vmem:[%s3 + $0x430] sm:$0xff]
    %v1441 = vld [vmem:[%s3 + $0x438] sm:$0xff]
    %v1442 = vld [vmem:[%s3 + $0x440] sm:$0xff]
    %v1443 = vld [vmem:[%s3 + $0x448] sm:$0xff]
    %v1444 = vld [vmem:[%s3 + $0x450] sm:$0xff]
    %v1445 = vld [vmem:[%s3 + $0x458] sm:$0xff]
    %v1446 = vld [vmem:[%s3 + $0x460] sm:$0xff]
    %v1447 = vld [vmem:[%s3 + $0x468] sm:$0xff]
    %v1448 = vld [vmem:[%s3 + $0x470] sm:$0xff]
    %v1449 = vld [vmem:[%s3 + $0x478] sm:$0xff]
    %v1450 = vld [vmem:[%s3 + $0x480] sm:$0xff]
    %v1451 = vld [vmem:[%s3 + $0x488] sm:$0xff]
    %v1452 = vld [vmem:[%s3 + $0x490] sm:$0xff]
    %v1453 = vld [vmem:[%s3 + $0x498] sm:$0xff]
    %v1454 = vld [vmem:[%s3 + $0x4a0] sm:$0xff]
    %v1455 = vld [vmem:[%s3 + $0x4a8] sm:$0xff]
    %v1456 = vld [vmem:[%s3 + $0x4b0] sm:$0xff]
    %v1457 = vld [vmem:[%s3 + $0x4b8] sm:$0xff]
    %v1458 = vld [vmem:[%s3 + $0x4c0] sm:$0xff]
    %v1459 = vld [vmem:[%s3 + $0x4c8] sm:$0xff]
    %v1460 = vld [vmem:[%s3 + $0x4d0] sm:$0xff]
    %v1461 = vld [vmem:[%s3 + $0x4d8] sm:$0xff]
    %v1462 = vld [vmem:[%s3 + $0x4e0] sm:$0xff]
    %v1463 = vld [vmem:[%s3 + $0x4e8] sm:$0xff]
    %v1464 = vld [vmem:[%s3 + $0x4f0] sm:$0xff]
    %v1465 = vld [vmem:[%s3 + $0x4f8] sm:$0xff]
    %v1466 = vld [vmem:[%s3 + $0x500] sm:$0xff]
    %v1467 = vld [vmem:[%s3 + $0x508] sm:$0xff]
    %v1468 = vld [vmem:[%s3 + $0x510] sm:$0xff]
    %v1469 = vld [vmem:[%s3 + $0x518] sm:$0xff]
    %v1470 = vld [vmem:[%s3 + $0x520] sm:$0xff]
    %v1471 = vld [vmem:[%s3 + $0x528] sm:$0xff]
    %v1472 = vld [vmem:[%s3 + $0x530] sm:$0xff]
    %v1473 = vld [vmem:[%s3 + $0x538] sm:$0xff]
    %v1474 = vld [vmem:[%s3 + $0x540] sm:$0xff]
    %v1475 = vld [vmem:[%s3 + $0x548] sm:$0xff]
    %v1476 = vld [vmem:[%s3 + $0x550] sm:$0xff]
    %v1477 = vld [vmem:[%s3 + $0x558] sm:$0xff]
    %v1478 = vld [vmem:[%s3 + $0x560] sm:$0xff]
    %v1479 = vld [vmem:[%s3 + $0x568] sm:$0xff]
    %v1480 = vld [vmem:[%s3 + $0x570] sm:$0xff]
    %v1481 = vld [vmem:[%s3 + $0x578] sm:$0xff]
    %v1482 = vld [vmem:[%s3 + $0x580] sm:$0xff]
    %v1483 = vld [vmem:[%s3 + $0x588] sm:$0xff]
    %v1484 = vld [vmem:[%s3 + $0x590] sm:$0xff]
    %v1485 = vld [vmem:[%s3 + $0x598] sm:$0xff]
    %v1486 = vld [vmem:[%s3 + $0x5a0] sm:$0xff]
    %v1487 = vld [vmem:[%s3 + $0x5a8] sm:$0xff]
    %v1488 = vld [vmem:[%s3 + $0x5b0] sm:$0xff]
    %v1489 = vld [vmem:[%s3 + $0x5b8] sm:$0xff]
    %v1490 = vld [vmem:[%s3 + $0x5c0] sm:$0xff]
    %v1491 = vld [vmem:[%s3 + $0x5c8] sm:$0xff]
    %v1492 = vld [vmem:[%s3 + $0x5d0] sm:$0xff]
    %v1493 = vld [vmem:[%s3 + $0x5d8] sm:$0xff]
    %v1494 = vld [vmem:[%s3 + $0x5e0] sm:$0xff]
    %v1495 = vld [vmem:[%s3 + $0x5e8] sm:$0xff]
    %v1496 = vld [vmem:[%s3 + $0x5f0] sm:$0xff]
    %v1497 = vld [vmem:[%s3 + $0x5f8] sm:$0xff]
    %v1498 = vld [vmem:[%s3 + $0x600] sm:$0xff]
    %v1499 = vld [vmem:[%s3 + $0x608] sm:$0xff]
    %v1500 = vld [vmem:[%s3 + $0x610] sm:$0xff]
    %v1501 = vld [vmem:[%s3 + $0x618] sm:$0xff]
    %v1502 = vld [vmem:[%s3 + $0x620] sm:$0xff]
    %v1503 = vld [vmem:[%s3 + $0x628] sm:$0xff]
    %v1504 = vld [vmem:[%s3 + $0x630] sm:$0xff]
    %v1505 = vld [vmem:[%s3 + $0x638] sm:$0xff]
    %v1506 = vld [vmem:[%s3 + $0x640] sm:$0xff]
    %v1507 = vld [vmem:[%s3 + $0x648] sm:$0xff]
    %v1508 = vld [vmem:[%s3 + $0x650] sm:$0xff]
    %v1509 = vld [vmem:[%s3 + $0x658] sm:$0xff]
    %v1510 = vld [vmem:[%s3 + $0x660] sm:$0xff]
    %v1511 = vld [vmem:[%s3 + $0x668] sm:$0xff]
    %v1512 = vld [vmem:[%s3 + $0x670] sm:$0xff]
    %v1513 = vld [vmem:[%s3 + $0x678] sm:$0xff]
    %v1514 = vld [vmem:[%s3 + $0x680] sm:$0xff]
    %v1515 = vld [vmem:[%s3 + $0x688] sm:$0xff]
    %v1516 = vld [vmem:[%s3 + $0x690] sm:$0xff]
    %v1517 = vld [vmem:[%s3 + $0x698] sm:$0xff]
    %v1518 = vld [vmem:[%s3 + $0x6a0] sm:$0xff]
    %v1519 = vld [vmem:[%s3 + $0x6a8] sm:$0xff]
    %v1520 = vld [vmem:[%s3 + $0x6b0] sm:$0xff]
    %v1521 = vld [vmem:[%s3 + $0x6b8] sm:$0xff]
    %v1522 = vld [vmem:[%s3 + $0x6c0] sm:$0xff]
    %v1523 = vld [vmem:[%s3 + $0x6c8] sm:$0xff]
    %v1524 = vld [vmem:[%s3 + $0x6d0] sm:$0xff]
    %v1525 = vld [vmem:[%s3 + $0x6d8] sm:$0xff]
    %v1526 = vld [vmem:[%s3 + $0x6e0] sm:$0xff]
    %v1527 = vld [vmem:[%s3 + $0x6e8] sm:$0xff]
    %v1528 = vld [vmem:[%s3 + $0x6f0] sm:$0xff]
    %v1529 = vld [vmem:[%s3 + $0x6f8] sm:$0xff]
    %v1530 = vld [vmem:[%s3 + $0x700] sm:$0xff]
    %v1531 = vld [vmem:[%s3 + $0x708] sm:$0xff]
    %v1532 = vld [vmem:[%s3 + $0x710] sm:$0xff]
    %v1533 = vld [vmem:[%s3 + $0x718] sm:$0xff]
    %v1534 = vld [vmem:[%s3 + $0x720] sm:$0xff]
    %v1535 = vld [vmem:[%s3 + $0x728] sm:$0xff]
    %v1536 = vld [vmem:[%s3 + $0x730] sm:$0xff]
    %v1537 = vld [vmem:[%s3 + $0x738] sm:$0xff]
    %v1538 = vld [vmem:[%s3 + $0x740] sm:$0xff]
    %v1539 = vld [vmem:[%s3 + $0x748] sm:$0xff]
    %v1540 = vld [vmem:[%s3 + $0x750] sm:$0xff]
    %v1541 = vld [vmem:[%s3 + $0x758] sm:$0xff]
    %v1542 = vld [vmem:[%s3 + $0x760] sm:$0xff]
    %v1543 = vld [vmem:[%s3 + $0x768] sm:$0xff]
    %v1544 = vld [vmem:[%s3 + $0x770] sm:$0xff]
    %v1545 = vld [vmem:[%s3 + $0x778] sm:$0xff]
    %v1546 = vld [vmem:[%s3 + $0x780] sm:$0xff]
    %v1547 = vld [vmem:[%s3 + $0x788] sm:$0xff]
    %v1548 = vld [vmem:[%s3 + $0x790] sm:$0xff]
    %v1549 = vld [vmem:[%s3 + $0x798] sm:$0xff]
    %v1550 = vld [vmem:[%s3 + $0x7a0] sm:$0xff]
    %v1551 = vld [vmem:[%s3 + $0x7a8] sm:$0xff]
    %v1552 = vld [vmem:[%s3 + $0x7b0] sm:$0xff]
    %v1553 = vld [vmem:[%s3 + $0x7b8] sm:$0xff]
    %v1554 = vld [vmem:[%s3 + $0x7c0] sm:$0xff]
    %v1555 = vld [vmem:[%s3 + $0x7c8] sm:$0xff]
    %v1556 = vld [vmem:[%s3 + $0x7d0] sm:$0xff]
    %v1557 = vld [vmem:[%s3 + $0x7d8] sm:$0xff]
    %v1558 = vld [vmem:[%s3 + $0x7e0] sm:$0xff]
    %v1559 = vld [vmem:[%s3 + $0x7e8] sm:$0xff]
    %v1560 = vld [vmem:[%s3 + $0x7f0] sm:$0xff]
    %v1561 = vld [vmem:[%s3 + $0x7f8] sm:$0xff]
    %v1562 = vld [vmem:[%s3 + $0x800] sm:$0xff]
    %v1563 = vld [vmem:[%s3 + $0x808] sm:$0xff]
    %v1564 = vld [vmem:[%s3 + $0x810] sm:$0xff]
    %v1565 = vld [vmem:[%s3 + $0x818] sm:$0xff]
    %v1566 = vld [vmem:[%s3 + $0x820] sm:$0xff]
    %v1567 = vld [vmem:[%s3 + $0x828] sm:$0xff]
    %v1568 = vld [vmem:[%s3 + $0x830] sm:$0xff]
    %v1569 = vld [vmem:[%s3 + $0x838] sm:$0xff]
    %v1570 = vld [vmem:[%s3 + $0x840] sm:$0xff]
    %v1571 = vld [vmem:[%s3 + $0x848] sm:$0xff]
    %v1572 = vld [vmem:[%s3 + $0x850] sm:$0xff]
    %v1573 = vld [vmem:[%s3 + $0x858] sm:$0xff]
    %v1574 = vld [vmem:[%s3 + $0x860] sm:$0xff]
    %v1575 = vld [vmem:[%s3 + $0x868] sm:$0xff]
    %v1576 = vld [vmem:[%s3 + $0x870] sm:$0xff]
    %v1577 = vld [vmem:[%s3 + $0x878] sm:$0xff]
    %v1578 = vld [vmem:[%s3 + $0x880] sm:$0xff]
    %v1579 = vld [vmem:[%s3 + $0x888] sm:$0xff]
    %v1580 = vld [vmem:[%s3 + $0x890] sm:$0xff]
    %v1581 = vld [vmem:[%s3 + $0x898] sm:$0xff]
    %v1582 = vld [vmem:[%s3 + $0x8a0] sm:$0xff]
    %v1583 = vld [vmem:[%s3 + $0x8a8] sm:$0xff]
    %v1584 = vld [vmem:[%s3 + $0x8b0] sm:$0xff]
    %v1585 = vld [vmem:[%s3 + $0x8b8] sm:$0xff]
    %v1586 = vld [vmem:[%s3 + $0x8c0] sm:$0xff]
    %v1587 = vld [vmem:[%s3 + $0x8c8] sm:$0xff]
    %v1588 = vld [vmem:[%s3 + $0x8d0] sm:$0xff]
    %v1589 = vld [vmem:[%s3 + $0x8d8] sm:$0xff]
    %v1590 = vld [vmem:[%s3 + $0x8e0] sm:$0xff]
    %v1591 = vld [vmem:[%s3 + $0x8e8] sm:$0xff]
    %v1592 = vld [vmem:[%s3 + $0x8f0] sm:$0xff]
    %v1593 = vld [vmem:[%s3 + $0x8f8] sm:$0xff]
    %v1594 = vld [vmem:[%s3 + $0x900] sm:$0xff]
    %v1595 = vld [vmem:[%s3 + $0x908] sm:$0xff]
    %v1596 = vld [vmem:[%s3 + $0x910] sm:$0xff]
    %v1597 = vld [vmem:[%s3 + $0x918] sm:$0xff]
    %v1598 = vld [vmem:[%s3 + $0x920] sm:$0xff]
    %v1599 = vld [vmem:[%s3 + $0x928] sm:$0xff]
    %v1600 = vld [vmem:[%s3 + $0x930] sm:$0xff]
    %v1601 = vld [vmem:[%s3 + $0x938] sm:$0xff]
    %v1602 = vld [vmem:[%s3 + $0x940] sm:$0xff]
    %v1603 = vld [vmem:[%s3 + $0x948] sm:$0xff]
    %v1604 = vld [vmem:[%s3 + $0x950] sm:$0xff]
    %v1605 = vld [vmem:[%s3 + $0x958] sm:$0xff]
    %v1606 = vld [vmem:[%s3 + $0x960] sm:$0xff]
    %v1607 = vld [vmem:[%s3 + $0x968] sm:$0xff]
    %v1608 = vld [vmem:[%s3 + $0x970] sm:$0xff]
    %v1609 = vld [vmem:[%s3 + $0x978] sm:$0xff]
    %v1610 = vld [vmem:[%s3 + $0x980] sm:$0xff]
    %v1611 = vld [vmem:[%s3 + $0x988] sm:$0xff]
    %v1612 = vld [vmem:[%s3 + $0x990] sm:$0xff]
    %v1613 = vld [vmem:[%s3 + $0x998] sm:$0xff]
    %v1614 = vld [vmem:[%s3 + $0x9a0] sm:$0xff]
    %v1615 = vld [vmem:[%s3 + $0x9a8] sm:$0xff]
    %v1616 = vld [vmem:[%s3 + $0x9b0] sm:$0xff]
    %v1617 = vld [vmem:[%s3 + $0x9b8] sm:$0xff]
    %v1618 = vld [vmem:[%s3 + $0x9c0] sm:$0xff]
    %v1619 = vld [vmem:[%s3 + $0x9c8] sm:$0xff]
    %v1620 = vld [vmem:[%s3 + $0x9d0] sm:$0xff]
    %v1621 = vld [vmem:[%s3 + $0x9d8] sm:$0xff]
    %v1622 = vld [vmem:[%s3 + $0x9e0] sm:$0xff]
    %v1623 = vld [vmem:[%s3 + $0x9e8] sm:$0xff]
    %v1624 = vld [vmem:[%s3 + $0x9f0] sm:$0xff]
    %v1625 = vld [vmem:[%s3 + $0x9f8] sm:$0xff]
    %v1626 = vld [vmem:[%s3 + $0xa00] sm:$0xff]
    %v1627 = vld [vmem:[%s3 + $0xa08] sm:$0xff]
    %v1628 = vld [vmem:[%s3 + $0xa10] sm:$0xff]
    %v1629 = vld [vmem:[%s3 + $0xa18] sm:$0xff]
    %v1630 = vld [vmem:[%s3 + $0xa20] sm:$0xff]
    %v1631 = vld [vmem:[%s3 + $0xa28] sm:$0xff]
    %v1632 = vld [vmem:[%s3 + $0xa30] sm:$0xff]
    %v1633 = vld [vmem:[%s3 + $0xa38] sm:$0xff]
    %v1634 = vld [vmem:[%s3 + $0xa40] sm:$0xff]
    %v1635 = vld [vmem:[%s3 + $0xa48] sm:$0xff]
    %v1636 = vld [vmem:[%s3 + $0xa50] sm:$0xff]
    %v1637 = vld [vmem:[%s3 + $0xa58] sm:$0xff]
    %v1638 = vld [vmem:[%s3 + $0xa60] sm:$0xff]
    %v1639 = vld [vmem:[%s3 + $0xa68] sm:$0xff]
    %v1640 = vld [vmem:[%s3 + $0xa70] sm:$0xff]
    %v1641 = vld [vmem:[%s3 + $0xa78] sm:$0xff]
    %v1642 = vld [vmem:[%s3 + $0xa80] sm:$0xff]
    %v1643 = vld [vmem:[%s3 + $0xa88] sm:$0xff]
    %v1644 = vld [vmem:[%s3 + $0xa90] sm:$0xff]
    %v1645 = vld [vmem:[%s3 + $0xa98] sm:$0xff]
    %v1646 = vld [vmem:[%s3 + $0xaa0] sm:$0xff]
    %v1647 = vld [vmem:[%s3 + $0xaa8] sm:$0xff]
    %v1648 = vld [vmem:[%s3 + $0xab0] sm:$0xff]
    %v1649 = vld [vmem:[%s3 + $0xab8] sm:$0xff]
    %v1650 = vld [vmem:[%s3 + $0xac0] sm:$0xff]
    %v1651 = vld [vmem:[%s3 + $0xac8] sm:$0xff]
    %v1652 = vld [vmem:[%s3 + $0xad0] sm:$0xff]
    %v1653 = vld [vmem:[%s3 + $0xad8] sm:$0xff]
    %v1654 = vld [vmem:[%s3 + $0xae0] sm:$0xff]
    %v1655 = vld [vmem:[%s3 + $0xae8] sm:$0xff]
    %v1656 = vld [vmem:[%s3 + $0xaf0] sm:$0xff]
    %v1657 = vld [vmem:[%s3 + $0xaf8] sm:$0xff]
    %v1658 = vld [vmem:[%s3 + $0xb00] sm:$0xff]
    %v1659 = vld [vmem:[%s3 + $0xb08] sm:$0xff]
    %v1660 = vld [vmem:[%s3 + $0xb10] sm:$0xff]
    %v1661 = vld [vmem:[%s3 + $0xb18] sm:$0xff]
    %v1662 = vld [vmem:[%s3 + $0xb20] sm:$0xff]
    %v1663 = vld [vmem:[%s3 + $0xb28] sm:$0xff]
    %v1664 = vld [vmem:[%s3 + $0xb30] sm:$0xff]
    %v1665 = vld [vmem:[%s3 + $0xb38] sm:$0xff]
    %v1666 = vld [vmem:[%s3 + $0xb40] sm:$0xff]
    %v1667 = vld [vmem:[%s3 + $0xb48] sm:$0xff]
    %v1668 = vld [vmem:[%s3 + $0xb50] sm:$0xff]
    %v1669 = vld [vmem:[%s3 + $0xb58] sm:$0xff]
    %v1670 = vld [vmem:[%s3 + $0xb60] sm:$0xff]
    %v1671 = vld [vmem:[%s3 + $0xb68] sm:$0xff]
    %v1672 = vld [vmem:[%s3 + $0xb70] sm:$0xff]
    %v1673 = vld [vmem:[%s3 + $0xb78] sm:$0xff]
    %v1674 = vld [vmem:[%s3 + $0xb80] sm:$0xff]
    %v1675 = vld [vmem:[%s3 + $0xb88] sm:$0xff]
    %v1676 = vld [vmem:[%s3 + $0xb90] sm:$0xff]
    %v1677 = vld [vmem:[%s3 + $0xb98] sm:$0xff]
    %v1678 = vld [vmem:[%s3 + $0xba0] sm:$0xff]
    %v1679 = vld [vmem:[%s3 + $0xba8] sm:$0xff]
    %v1680 = vld [vmem:[%s3 + $0xbb0] sm:$0xff]
    %v1681 = vld [vmem:[%s3 + $0xbb8] sm:$0xff]
    %v1682 = vld [vmem:[%s3 + $0xbc0] sm:$0xff]
    %v1683 = vld [vmem:[%s3 + $0xbc8] sm:$0xff]
    %v1684 = vld [vmem:[%s3 + $0xbd0] sm:$0xff]
    %v1685 = vld [vmem:[%s3 + $0xbd8] sm:$0xff]
    %v1686 = vld [vmem:[%s3 + $0xbe0] sm:$0xff]
    %v1687 = vld [vmem:[%s3 + $0xbe8] sm:$0xff]
    %v1688 = vld [vmem:[%s3 + $0xbf0] sm:$0xff]
    %v1689 = vld [vmem:[%s3 + $0xbf8] sm:$0xff]
    %v1690 = vld [vmem:[%s3 + $0xc00] sm:$0xff]
    %v1691 = vld [vmem:[%s3 + $0xc08] sm:$0xff]
    %v1692 = vld [vmem:[%s3 + $0xc10] sm:$0xff]
    %v1693 = vld [vmem:[%s3 + $0xc18] sm:$0xff]
    %v1694 = vld [vmem:[%s3 + $0xc20] sm:$0xff]
    %v1695 = vld [vmem:[%s3 + $0xc28] sm:$0xff]
    %v1696 = vld [vmem:[%s3 + $0xc30] sm:$0xff]
    %v1697 = vld [vmem:[%s3 + $0xc38] sm:$0xff]
    %v1698 = vld [vmem:[%s3 + $0xc40] sm:$0xff]
    %v1699 = vld [vmem:[%s3 + $0xc48] sm:$0xff]
    %v1700 = vld [vmem:[%s3 + $0xc50] sm:$0xff]
    %v1701 = vld [vmem:[%s3 + $0xc58] sm:$0xff]
    %v1702 = vld [vmem:[%s3 + $0xc60] sm:$0xff]
    %v1703 = vld [vmem:[%s3 + $0xc68] sm:$0xff]
    %v1704 = vld [vmem:[%s3 + $0xc70] sm:$0xff]
    %v1705 = vld [vmem:[%s3 + $0xc78] sm:$0xff]
    %v1706 = vld [vmem:[%s3 + $0xc80] sm:$0xff]
    %v1707 = vld [vmem:[%s3 + $0xc88] sm:$0xff]
    %v1708 = vld [vmem:[%s3 + $0xc90] sm:$0xff]
    %v1709 = vld [vmem:[%s3 + $0xc98] sm:$0xff]
    %v1710 = vld [vmem:[%s3 + $0xca0] sm:$0xff]
    %v1711 = vld [vmem:[%s3 + $0xca8] sm:$0xff]
    %v1712 = vld [vmem:[%s3 + $0xcb0] sm:$0xff]
    %v1713 = vld [vmem:[%s3 + $0xcb8] sm:$0xff]
    %v1714 = vld [vmem:[%s3 + $0xcc0] sm:$0xff]
    %v1715 = vld [vmem:[%s3 + $0xcc8] sm:$0xff]
    %v1716 = vld [vmem:[%s3 + $0xcd0] sm:$0xff]
    %v1717 = vld [vmem:[%s3 + $0xcd8] sm:$0xff]
    %v1718 = vld [vmem:[%s3 + $0xce0] sm:$0xff]
    %v1719 = vld [vmem:[%s3 + $0xce8] sm:$0xff]
    %v1720 = vld [vmem:[%s3 + $0xcf0] sm:$0xff]
    %v1721 = vld [vmem:[%s3 + $0xcf8] sm:$0xff]
    %v1722 = vld [vmem:[%s3 + $0xd00] sm:$0xff]
    %v1723 = vld [vmem:[%s3 + $0xd08] sm:$0xff]
    %v1724 = vld [vmem:[%s3 + $0xd10] sm:$0xff]
    %v1725 = vld [vmem:[%s3 + $0xd18] sm:$0xff]
    %v1726 = vld [vmem:[%s3 + $0xd20] sm:$0xff]
    %v1727 = vld [vmem:[%s3 + $0xd28] sm:$0xff]
    %v1728 = vld [vmem:[%s3 + $0xd30] sm:$0xff]
    %v1729 = vld [vmem:[%s3 + $0xd38] sm:$0xff]
    %v1730 = vld [vmem:[%s3 + $0xd40] sm:$0xff]
    %v1731 = vld [vmem:[%s3 + $0xd48] sm:$0xff]
    %v1732 = vld [vmem:[%s3 + $0xd50] sm:$0xff]
    %v1733 = vld [vmem:[%s3 + $0xd58] sm:$0xff]
    %v1734 = vld [vmem:[%s3 + $0xd60] sm:$0xff]
    %v1735 = vld [vmem:[%s3 + $0xd68] sm:$0xff]
    %v1736 = vld [vmem:[%s3 + $0xd70] sm:$0xff]
    %v1737 = vld [vmem:[%s3 + $0xd78] sm:$0xff]
    %v1738 = vld [vmem:[%s3 + $0xd80] sm:$0xff]
    %v1739 = vld [vmem:[%s3 + $0xd88] sm:$0xff]
    %v1740 = vld [vmem:[%s3 + $0xd90] sm:$0xff]
    %v1741 = vld [vmem:[%s3 + $0xd98] sm:$0xff]
    %v1742 = vld [vmem:[%s3 + $0xda0] sm:$0xff]
    %v1743 = vld [vmem:[%s3 + $0xda8] sm:$0xff]
    %v1744 = vld [vmem:[%s3 + $0xdb0] sm:$0xff]
    %v1745 = vld [vmem:[%s3 + $0xdb8] sm:$0xff]
    %v1746 = vld [vmem:[%s3 + $0xdc0] sm:$0xff]
    %v1747 = vld [vmem:[%s3 + $0xdc8] sm:$0xff]
    %v1748 = vld [vmem:[%s3 + $0xdd0] sm:$0xff]
    %v1749 = vld [vmem:[%s3 + $0xdd8] sm:$0xff]
    %v1750 = vld [vmem:[%s3 + $0xde0] sm:$0xff]
    %v1751 = vld [vmem:[%s3 + $0xde8] sm:$0xff]
    %v1752 = vld [vmem:[%s3 + $0xdf0] sm:$0xff]
    %v1753 = vld [vmem:[%s3 + $0xdf8] sm:$0xff]
    %v1754 = vld [vmem:[%s3 + $0xe00] sm:$0xff]
    %v1755 = vld [vmem:[%s3 + $0xe08] sm:$0xff]
    %vm1756 = vcmask 392192
    %v1758 = vsel %vm1756, %v1289, 0
    %v1761 = vsel %vm1756, %v1299, 0
    %1763 = vmatprep.subr.mxu0 %v1307
    %1764 = vmatpush1.msra.mxu0 %v1306
    %1765 = vmatprep.subr.mxu0 %v1310
    %1766 = vmatpush1.msra.mxu0 %v1309
    %1767 = vmatprep.subr.mxu0 %v1313
    %1768 = vmatpush1.msra.mxu0 %v1312
    %1769 = vmatprep.subr.mxu0 %v1316
    %1770 = vmatpush1.msra.mxu0 %v1315
    %1771 = vmatprep.subr.mxu0 %v1319
    %1772 = vmatpush1.msra.mxu0 %v1318
    %1773 = vmatprep.subr.mxu0 %v1322
    %1774 = vmatpush1.msra.mxu0 %v1321
    %1775 = vmatprep.subr.mxu0 %v1325
    %1776 = vmatpush1.msra.mxu0 %v1324
    %1777 = vmatprep.subr.mxu0 %v1328
    %1778 = vmatpush1.msra.mxu0 %v1327
    %1779 = vmatprep.subr.mxu0 %v1331
    %1780 = vmatpush1.msra.mxu0 %v1330
    %1781 = vmatprep.subr.mxu0 %v1334
    %1782 = vmatpush1.msra.mxu0 %v1333
    %1783 = vmatprep.subr.mxu0 %v1337
    %1784 = vmatpush1.msra.mxu0 %v1336
    %1785 = vmatprep.subr.mxu0 %v1340
    %1786 = vmatpush1.msra.mxu0 %v1339
    %1787 = vmatprep.subr.mxu0 %v1343
    %1788 = vmatpush1.msra.mxu0 %v1342
    %1789 = vmatprep.subr.mxu0 %v1346
    %1790 = vmatpush1.msra.mxu0 %v1345
    %1791 = vmatprep.subr.mxu0 %v1349
    %1792 = vmatpush1.msra.mxu0 %v1348
    %1793 = vmatprep.subr.mxu0 %v1352
    %1794 = vmatpush1.msra.mxu0 %v1351
    %1795 = vmatprep.subr.mxu0 %v1355
    %1796 = vmatpush1.msra.mxu0 %v1354
    %1797 = vmatprep.subr.mxu0 %v1358
    %1798 = vmatpush1.msra.mxu0 %v1357
    %1799 = vmatprep.subr.mxu0 %v1361
    %1800 = vmatpush1.msra.mxu0 %v1360
    %1801 = vmatprep.subr.mxu0 %v1364
    %1802 = vmatpush1.msra.mxu0 %v1363
    %1803 = vmatprep.subr.mxu0 %v1367
    %1804 = vmatpush1.msra.mxu0 %v1366
    %1805 = vmatprep.subr.mxu0 %v1370
    %1806 = vmatpush1.msra.mxu0 %v1369
    %1807 = vmatprep.subr.mxu0 %v1373
    %1808 = vmatpush1.msra.mxu0 %v1372
    %1809 = vmatprep.subr.mxu0 %v1376
    %1810 = vmatpush1.msra.mxu0 %v1375
    %1811 = vmatprep.subr.mxu0 %v1379
    %1812 = vmatpush1.msra.mxu0 %v1378
    %1813 = vmatprep.subr.mxu0 %v1382
    %1814 = vmatpush1.msra.mxu0 %v1381
    %1815 = vmatprep.subr.mxu0 %v1385
    %1816 = vmatpush1.msra.mxu0 %v1384
    %1817 = vmatprep.subr.mxu0 %v1388
    %1818 = vmatpush1.msra.mxu0 %v1387
    %1819 = vmatprep.subr.mxu0 %v1391
    %1820 = vmatpush1.msra.mxu0 %v1390
    %1821 = vmatprep.subr.mxu0 %v1394
    %1822 = vmatpush1.msra.mxu0 %v1393
    %1823 = vmatprep.subr.mxu0 %v1397
    %1824 = vmatpush1.msra.mxu0 %v1396
    %1825 = vmatprep.subr.mxu0 %v1400
    %1826 = vmatpush1.msra.mxu0 %v1399
    %1827 = vmatprep.mubr.f32.mxu0 %v1281
    %1828 = vmatmul.mubr.f32.gmra.mrb[0].mxu0 %v1280
    %v1829 = vpop.f32.mrb[0].mxu0
    %v1830 = vadd.f32 0.0, %v1829
    %v1831 = vpop.f32.mrb[0].mxu0
    %v1832 = vadd.f32 0.0, %v1831
    %1833 = vmatprep.mubr.f32.mxu0 %v1291
    %1834 = vmatmul.mubr.f32.gmra.mrb[0].mxu0 %v1290
    %v1835 = vpop.f32.mrb[0].mxu0
    %v1836 = vadd.f32 0.0, %v1835
    %v1837 = vpop.f32.mrb[0].mxu0
    %v1838 = vadd.f32 0.0, %v1837
    %1839 = vdwg.mxu0
    %1840 = vmatprep.subr.mxu0 %v1403
    %1841 = vmatpush1.msra.mxu0 %v1402
    %1842 = vmatprep.subr.mxu0 %v1406
    %1843 = vmatpush1.msra.mxu0 %v1405
    %1844 = vmatprep.subr.mxu0 %v1409
    %1845 = vmatpush1.msra.mxu0 %v1408
    %1846 = vmatprep.subr.mxu0 %v1412
    %1847 = vmatpush1.msra.mxu0 %v1411
    %1848 = vmatprep.subr.mxu0 %v1415
    %1849 = vmatpush1.msra.mxu0 %v1414
    %1850 = vmatprep.subr.mxu0 %v1418
    %1851 = vmatpush1.msra.mxu0 %v1417
    %1852 = vmatprep.subr.mxu0 %v1421
    %1853 = vmatpush1.msra.mxu0 %v1420
    %1854 = vmatprep.subr.mxu0 %v1424
    %1855 = vmatpush1.msra.mxu0 %v1423
    %1856 = vmatprep.subr.mxu0 %v1427
    %1857 = vmatpush1.msra.mxu0 %v1426
    %1858 = vmatprep.subr.mxu0 %v1430
    %1859 = vmatpush1.msra.mxu0 %v1429
    %1860 = vmatprep.subr.mxu0 %v1433
    %1861 = vmatpush1.msra.mxu0 %v1432
    %1862 = vmatprep.subr.mxu0 %v1436
    %1863 = vmatpush1.msra.mxu0 %v1435
    %1864 = vmatprep.subr.mxu0 %v1439
    %1865 = vmatpush1.msra.mxu0 %v1438
    %1866 = vmatprep.subr.mxu0 %v1442
    %1867 = vmatpush1.msra.mxu0 %v1441
    %1868 = vmatprep.subr.mxu0 %v1445
    %1869 = vmatpush1.msra.mxu0 %v1444
    %1870 = vmatprep.subr.mxu0 %v1448
    %1871 = vmatpush1.msra.mxu0 %v1447
    %1872 = vmatprep.subr.mxu0 %v1451
    %1873 = vmatpush1.msra.mxu0 %v1450
    %1874 = vmatprep.subr.mxu0 %v1454
    %1875 = vmatpush1.msra.mxu0 %v1453
    %1876 = vmatprep.subr.mxu0 %v1457
    %1877 = vmatpush1.msra.mxu0 %v1456
    %1878 = vmatprep.subr.mxu0 %v1460
    %1879 = vmatpush1.msra.mxu0 %v1459
    %1880 = vmatprep.subr.mxu0 %v1463
    %1881 = vmatpush1.msra.mxu0 %v1462
    %1882 = vmatprep.subr.mxu0 %v1466
    %1883 = vmatpush1.msra.mxu0 %v1465
    %1884 = vmatprep.subr.mxu0 %v1469
    %1885 = vmatpush1.msra.mxu0 %v1468
    %1886 = vmatprep.subr.mxu0 %v1472
    %1887 = vmatpush1.msra.mxu0 %v1471
    %1888 = vmatprep.subr.mxu0 %v1475
    %1889 = vmatpush1.msra.mxu0 %v1474
    %1890 = vmatprep.subr.mxu0 %v1478
    %1891 = vmatpush1.msra.mxu0 %v1477
    %1892 = vmatprep.subr.mxu0 %v1481
    %1893 = vmatpush1.msra.mxu0 %v1480
    %1894 = vmatprep.subr.mxu0 %v1484
    %1895 = vmatpush1.msra.mxu0 %v1483
    %1896 = vmatprep.subr.mxu0 %v1487
    %1897 = vmatpush1.msra.mxu0 %v1486
    %1898 = vmatprep.subr.mxu0 %v1490
    %1899 = vmatpush1.msra.mxu0 %v1489
    %1900 = vmatprep.subr.mxu0 %v1493
    %1901 = vmatpush1.msra.mxu0 %v1492
    %1902 = vmatprep.subr.mxu0 %v1496
    %1903 = vmatpush1.msra.mxu0 %v1495
    %1904 = vmatprep.mubr.f32.mxu0 %v1283
    %1905 = vmatmul.mubr.f32.gmra.mrb[0].mxu0 %v1282
    %v1906 = vpop.f32.mrb[0].mxu0
    %v1907 = vadd.f32 %v1830, %v1906
    %v1908 = vpop.f32.mrb[0].mxu0
    %v1909 = vadd.f32 %v1832, %v1908
    %1910 = vmatprep.mubr.f32.mxu0 %v1293
    %1911 = vmatmul.mubr.f32.gmra.mrb[0].mxu0 %v1292
    %v1912 = vpop.f32.mrb[0].mxu0
    %v1913 = vadd.f32 %v1836, %v1912
    %v1914 = vpop.f32.mrb[0].mxu0
    %v1915 = vadd.f32 %v1838, %v1914
    %1916 = vdwg.mxu0
    %1917 = vmatprep.subr.mxu0 %v1499
    %1918 = vmatpush1.msra.mxu0 %v1498
    %1919 = vmatprep.subr.mxu0 %v1502
    %1920 = vmatpush1.msra.mxu0 %v1501
    %1921 = vmatprep.subr.mxu0 %v1505
    %1922 = vmatpush1.msra.mxu0 %v1504
    %1923 = vmatprep.subr.mxu0 %v1508
    %1924 = vmatpush1.msra.mxu0 %v1507
    %1925 = vmatprep.subr.mxu0 %v1511
    %1926 = vmatpush1.msra.mxu0 %v1510
    %1927 = vmatprep.subr.mxu0 %v1514
    %1928 = vmatpush1.msra.mxu0 %v1513
    %1929 = vmatprep.subr.mxu0 %v1517
    %1930 = vmatpush1.msra.mxu0 %v1516
    %1931 = vmatprep.subr.mxu0 %v1520
    %1932 = vmatpush1.msra.mxu0 %v1519
    %1933 = vmatprep.subr.mxu0 %v1523
    %1934 = vmatpush1.msra.mxu0 %v1522
    %1935 = vmatprep.subr.mxu0 %v1526
    %1936 = vmatpush1.msra.mxu0 %v1525
    %1937 = vmatprep.subr.mxu0 %v1529
    %1938 = vmatpush1.msra.mxu0 %v1528
    %1939 = vmatprep.subr.mxu0 %v1532
    %1940 = vmatpush1.msra.mxu0 %v1531
    %1941 = vmatprep.subr.mxu0 %v1535
    %1942 = vmatpush1.msra.mxu0 %v1534
    %1943 = vmatprep.subr.mxu0 %v1538
    %1944 = vmatpush1.msra.mxu0 %v1537
    %1945 = vmatprep.subr.mxu0 %v1541
    %1946 = vmatpush1.msra.mxu0 %v1540
    %1947 = vmatprep.subr.mxu0 %v1544
    %1948 = vmatpush1.msra.mxu0 %v1543
    %1949 = vmatprep.subr.mxu0 %v1547
    %1950 = vmatpush1.msra.mxu0 %v1546
    %1951 = vmatprep.subr.mxu0 %v1550
    %1952 = vmatpush1.msra.mxu0 %v1549
    %1953 = vmatprep.subr.mxu0 %v1553
    %1954 = vmatpush1.msra.mxu0 %v1552
    %1955 = vmatprep.subr.mxu0 %v1556
    %1956 = vmatpush1.msra.mxu0 %v1555
    %1957 = vmatprep.subr.mxu0 %v1559
    %1958 = vmatpush1.msra.mxu0 %v1558
    %1959 = vmatprep.subr.mxu0 %v1562
    %1960 = vmatpush1.msra.mxu0 %v1561
    %1961 = vmatprep.subr.mxu0 %v1565
    %1962 = vmatpush1.msra.mxu0 %v1564
    %1963 = vmatprep.subr.mxu0 %v1568
    %1964 = vmatpush1.msra.mxu0 %v1567
    %1965 = vmatprep.subr.mxu0 %v1571
    %1966 = vmatpush1.msra.mxu0 %v1570
    %1967 = vmatprep.subr.mxu0 %v1574
    %1968 = vmatpush1.msra.mxu0 %v1573
    %1969 = vmatprep.subr.mxu0 %v1577
    %1970 = vmatpush1.msra.mxu0 %v1576
    %1971 = vmatprep.subr.mxu0 %v1580
    %1972 = vmatpush1.msra.mxu0 %v1579
    %1973 = vmatprep.subr.mxu0 %v1583
    %1974 = vmatpush1.msra.mxu0 %v1582
    %1975 = vmatprep.subr.mxu0 %v1586
    %1976 = vmatpush1.msra.mxu0 %v1585
    %1977 = vmatprep.subr.mxu0 %v1589
    %1978 = vmatpush1.msra.mxu0 %v1588
    %1979 = vmatprep.subr.mxu0 %v1592
    %1980 = vmatpush1.msra.mxu0 %v1591
    %1981 = vmatprep.mubr.f32.mxu0 %v1285
    %1982 = vmatmul.mubr.f32.gmra.mrb[0].mxu0 %v1284
    %v1983 = vpop.f32.mrb[0].mxu0
    %v1984 = vadd.f32 %v1907, %v1983
    %v1985 = vpop.f32.mrb[0].mxu0
    %v1986 = vadd.f32 %v1909, %v1985
    %1987 = vmatprep.mubr.f32.mxu0 %v1295
    %1988 = vmatmul.mubr.f32.gmra.mrb[0].mxu0 %v1294
    %v1989 = vpop.f32.mrb[0].mxu0
    %v1990 = vadd.f32 %v1913, %v1989
    %v1991 = vpop.f32.mrb[0].mxu0
    %v1992 = vadd.f32 %v1915, %v1991
    %1993 = vdwg.mxu0
    %1994 = vmatprep.subr.mxu0 %v1595
    %1995 = vmatpush1.msra.mxu0 %v1594
    %1996 = vmatprep.subr.mxu0 %v1598
    %1997 = vmatpush1.msra.mxu0 %v1597
    %1998 = vmatprep.subr.mxu0 %v1601
    %1999 = vmatpush1.msra.mxu0 %v1600
    %2000 = vmatprep.subr.mxu0 %v1604
    %2001 = vmatpush1.msra.mxu0 %v1603
    %2002 = vmatprep.subr.mxu0 %v1607
    %2003 = vmatpush1.msra.mxu0 %v1606
    %2004 = vmatprep.subr.mxu0 %v1610
    %2005 = vmatpush1.msra.mxu0 %v1609
    %2006 = vmatprep.subr.mxu0 %v1613
    %2007 = vmatpush1.msra.mxu0 %v1612
    %2008 = vmatprep.subr.mxu0 %v1616
    %2009 = vmatpush1.msra.mxu0 %v1615
    %2010 = vmatprep.subr.mxu0 %v1619
    %2011 = vmatpush1.msra.mxu0 %v1618
    %2012 = vmatprep.subr.mxu0 %v1622
    %2013 = vmatpush1.msra.mxu0 %v1621
    %2014 = vmatprep.subr.mxu0 %v1625
    %2015 = vmatpush1.msra.mxu0 %v1624
    %2016 = vmatprep.subr.mxu0 %v1628
    %2017 = vmatpush1.msra.mxu0 %v1627
    %2018 = vmatprep.subr.mxu0 %v1631
    %2019 = vmatpush1.msra.mxu0 %v1630
    %2020 = vmatprep.subr.mxu0 %v1634
    %2021 = vmatpush1.msra.mxu0 %v1633
    %2022 = vmatprep.subr.mxu0 %v1637
    %2023 = vmatpush1.msra.mxu0 %v1636
    %2024 = vmatprep.subr.mxu0 %v1640
    %2025 = vmatpush1.msra.mxu0 %v1639
    %2026 = vmatprep.subr.mxu0 %v1643
    %2027 = vmatpush1.msra.mxu0 %v1642
    %2028 = vmatprep.subr.mxu0 %v1646
    %2029 = vmatpush1.msra.mxu0 %v1645
    %2030 = vmatprep.subr.mxu0 %v1649
    %2031 = vmatpush1.msra.mxu0 %v1648
    %2032 = vmatprep.subr.mxu0 %v1652
    %2033 = vmatpush1.msra.mxu0 %v1651
    %2034 = vmatprep.subr.mxu0 %v1655
    %2035 = vmatpush1.msra.mxu0 %v1654
    %2036 = vmatprep.subr.mxu0 %v1658
    %2037 = vmatpush1.msra.mxu0 %v1657
    %2038 = vmatprep.subr.mxu0 %v1661
    %2039 = vmatpush1.msra.mxu0 %v1660
    %2040 = vmatprep.subr.mxu0 %v1664
    %2041 = vmatpush1.msra.mxu0 %v1663
    %2042 = vmatprep.subr.mxu0 %v1667
    %2043 = vmatpush1.msra.mxu0 %v1666
    %2044 = vmatprep.subr.mxu0 %v1670
    %2045 = vmatpush1.msra.mxu0 %v1669
    %2046 = vmatprep.subr.mxu0 %v1673
    %2047 = vmatpush1.msra.mxu0 %v1672
    %2048 = vmatprep.subr.mxu0 %v1676
    %2049 = vmatpush1.msra.mxu0 %v1675
    %2050 = vmatprep.subr.mxu0 %v1679
    %2051 = vmatpush1.msra.mxu0 %v1678
    %2052 = vmatprep.subr.mxu0 %v1682
    %2053 = vmatpush1.msra.mxu0 %v1681
    %2054 = vmatprep.subr.mxu0 %v1685
    %2055 = vmatpush1.msra.mxu0 %v1684
    %2056 = vmatprep.subr.mxu0 %v1688
    %2057 = vmatpush1.msra.mxu0 %v1687
    %2058 = vmatprep.mubr.f32.mxu0 %v1287
    %2059 = vmatmul.mubr.f32.gmra.mrb[0].mxu0 %v1286
    %v2060 = vpop.f32.mrb[0].mxu0
    %v2061 = vadd.f32 %v1984, %v2060
    %v2062 = vpop.f32.mrb[0].mxu0
    %v2063 = vadd.f32 %v1986, %v2062
    %2064 = vmatprep.mubr.f32.mxu0 %v1297
    %2065 = vmatmul.mubr.f32.gmra.mrb[0].mxu0 %v1296
    %v2066 = vpop.f32.mrb[0].mxu0
    %v2067 = vadd.f32 %v1990, %v2066
    %v2068 = vpop.f32.mrb[0].mxu0
    %v2069 = vadd.f32 %v1992, %v2068
    %2070 = vdwg.mxu0
    %2071 = vmatprep.subr.mxu0 %v1691
    %2072 = vmatpush1.msra.mxu0 %v1690
    %2073 = vmatprep.subr.mxu0 %v1694
    %2074 = vmatpush1.msra.mxu0 %v1693
    %2075 = vmatprep.subr.mxu0 %v1697
    %2076 = vmatpush1.msra.mxu0 %v1696
    %2077 = vmatprep.subr.mxu0 %v1700
    %2078 = vmatpush1.msra.mxu0 %v1699
    %2079 = vmatprep.subr.mxu0 %v1703
    %2080 = vmatpush1.msra.mxu0 %v1702
    %2081 = vmatprep.subr.mxu0 %v1706
    %2082 = vmatpush1.msra.mxu0 %v1705
    %2083 = vmatprep.subr.mxu0 %v1709
    %2084 = vmatpush1.msra.mxu0 %v1708
    %2085 = vmatprep.subr.mxu0 %v1712
    %2086 = vmatpush1.msra.mxu0 %v1711
    %2087 = vmatprep.subr.mxu0 %v1715
    %2088 = vmatpush1.msra.mxu0 %v1714
    %2089 = vmatprep.subr.mxu0 %v1718
    %2090 = vmatpush1.msra.mxu0 %v1717
    %2091 = vmatprep.subr.mxu0 %v1721
    %2092 = vmatpush1.msra.mxu0 %v1720
    %2093 = vmatprep.subr.mxu0 %v1724
    %2094 = vmatpush1.msra.mxu0 %v1723
    %2095 = vmatprep.subr.mxu0 %v1727
    %2096 = vmatpush1.msra.mxu0 %v1726
    %2097 = vmatprep.subr.mxu0 %v1730
    %2098 = vmatpush1.msra.mxu0 %v1729
    %2099 = vmatprep.subr.mxu0 %v1733
    %2100 = vmatpush1.msra.mxu0 %v1732
    %2101 = vmatprep.subr.mxu0 %v1736
    %2102 = vmatpush1.msra.mxu0 %v1735
    %2103 = vmatprep.subr.mxu0 %v1739
    %2104 = vmatpush1.msra.mxu0 %v1738
    %2105 = vmatprep.subr.mxu0 %v1742
    %2106 = vmatpush1.msra.mxu0 %v1741
    %2107 = vmatprep.subr.mxu0 %v1745
    %2108 = vmatpush1.msra.mxu0 %v1744
    %2109 = vmatprep.subr.mxu0 %v1748
    %2110 = vmatpush1.msra.mxu0 %v1747
    %2111 = vmatprep.subr.mxu0 %v1751
    %2112 = vmatpush1.msra.mxu0 %v1750
    %2113 = vmatprep.subr.mxu0 %v1754
    %2114 = vmatpush1.msra.mxu0 %v1753
    %2115 = vmatprep.subr.mxu0 0.0
    %2116 = vmatpush1.msra.mxu0 0.0
    %2117 = vmatprep.subr.mxu0 0.0
    %2118 = vmatpush1.msra.mxu0 0.0
    %2119 = vmatprep.subr.mxu0 0.0
    %2120 = vmatpush1.msra.mxu0 0.0
    %2121 = vmatprep.subr.mxu0 0.0
    %2122 = vmatpush1.msra.mxu0 0.0
    %2123 = vmatprep.subr.mxu0 0.0
    %2124 = vmatpush1.msra.mxu0 0.0
    %2125 = vmatprep.subr.mxu0 0.0
    %2126 = vmatpush1.msra.mxu0 0.0
    %2127 = vmatprep.subr.mxu0 0.0
    %2128 = vmatpush1.msra.mxu0 0.0
    %2129 = vmatprep.subr.mxu0 0.0
    %2130 = vmatpush1.msra.mxu0 0.0
    %2131 = vmatprep.subr.mxu0 0.0
    %2132 = vmatpush1.msra.mxu0 0.0
    %2133 = vmatprep.subr.mxu0 0.0
    %2134 = vmatpush1.msra.mxu0 0.0
    %2135 = vmatprep.mubr.f32.mxu0 %v1758
    %2136 = vmatmul.mubr.f32.gmra.mrb[0].mxu0 %v1288
    %v2137 = vpop.f32.mrb[0].mxu0
    %v2138 = vadd.f32 %v2061, %v2137
    %v2139 = vpop.f32.mrb[0].mxu0
    %v2140 = vadd.f32 %v2063, %v2139
    %2141 = vmatprep.mubr.f32.mxu0 %v1761
    %2142 = vmatmul.mubr.f32.gmra.mrb[0].mxu0 %v1298
    %v2143 = vpop.f32.mrb[0].mxu0
    %v2144 = vadd.f32 %v2067, %v2143
    %v2145 = vpop.f32.mrb[0].mxu0
    %v2146 = vadd.f32 %v2069, %v2145
    %2147 = vdwg.mxu0
    %2148 = vmatprep.subr.mxu0 0.0
    %2149 = vmatpush1.msra.mxu0 %v1308
    %2150 = vmatprep.subr.mxu0 0.0
    %2151 = vmatpush1.msra.mxu0 %v1311
    %2152 = vmatprep.subr.mxu0 0.0
    %2153 = vmatpush1.msra.mxu0 %v1314
    %2154 = vmatprep.subr.mxu0 0.0
    %2155 = vmatpush1.msra.mxu0 %v1317
    %2156 = vmatprep.subr.mxu0 0.0
    %2157 = vmatpush1.msra.mxu0 %v1320
    %2158 = vmatprep.subr.mxu0 0.0
    %2159 = vmatpush1.msra.mxu0 %v1323
    %2160 = vmatprep.subr.mxu0 0.0
    %2161 = vmatpush1.msra.mxu0 %v1326
    %2162 = vmatprep.subr.mxu0 0.0
    %2163 = vmatpush1.msra.mxu0 %v1329
    %2164 = vmatprep.subr.mxu0 0.0
    %2165 = vmatpush1.msra.mxu0 %v1332
    %2166 = vmatprep.subr.mxu0 0.0
    %2167 = vmatpush1.msra.mxu0 %v1335
    %2168 = vmatprep.subr.mxu0 0.0
    %2169 = vmatpush1.msra.mxu0 %v1338
    %2170 = vmatprep.subr.mxu0 0.0
    %2171 = vmatpush1.msra.mxu0 %v1341
    %2172 = vmatprep.subr.mxu0 0.0
    %2173 = vmatpush1.msra.mxu0 %v1344
    %2174 = vmatprep.subr.mxu0 0.0
    %2175 = vmatpush1.msra.mxu0 %v1347
    %2176 = vmatprep.subr.mxu0 0.0
    %2177 = vmatpush1.msra.mxu0 %v1350
    %2178 = vmatprep.subr.mxu0 0.0
    %2179 = vmatpush1.msra.mxu0 %v1353
    %2180 = vmatprep.subr.mxu0 0.0
    %2181 = vmatpush1.msra.mxu0 %v1356
    %2182 = vmatprep.subr.mxu0 0.0
    %2183 = vmatpush1.msra.mxu0 %v1359
    %2184 = vmatprep.subr.mxu0 0.0
    %2185 = vmatpush1.msra.mxu0 %v1362
    %2186 = vmatprep.subr.mxu0 0.0
    %2187 = vmatpush1.msra.mxu0 %v1365
    %2188 = vmatprep.subr.mxu0 0.0
    %2189 = vmatpush1.msra.mxu0 %v1368
    %2190 = vmatprep.subr.mxu0 0.0
    %2191 = vmatpush1.msra.mxu0 %v1371
    %2192 = vmatprep.subr.mxu0 0.0
    %2193 = vmatpush1.msra.mxu0 %v1374
    %2194 = vmatprep.subr.mxu0 0.0
    %2195 = vmatpush1.msra.mxu0 %v1377
    %2196 = vmatprep.subr.mxu0 0.0
    %2197 = vmatpush1.msra.mxu0 %v1380
    %2198 = vmatprep.subr.mxu0 0.0
    %2199 = vmatpush1.msra.mxu0 %v1383
    %2200 = vmatprep.subr.mxu0 0.0
    %2201 = vmatpush1.msra.mxu0 %v1386
    %2202 = vmatprep.subr.mxu0 0.0
    %2203 = vmatpush1.msra.mxu0 %v1389
    %2204 = vmatprep.subr.mxu0 0.0
    %2205 = vmatpush1.msra.mxu0 %v1392
    %2206 = vmatprep.subr.mxu0 0.0
    %2207 = vmatpush1.msra.mxu0 %v1395
    %2208 = vmatprep.subr.mxu0 0.0
    %2209 = vmatpush1.msra.mxu0 %v1398
    %2210 = vmatprep.subr.mxu0 0.0
    %2211 = vmatpush1.msra.mxu0 %v1401
    %2212 = vmatprep.mubr.f32.mxu0 %v1281
    %2213 = vmatmul.mubr.f32.gmra.mrb[0].mxu0 %v1280
    %v2214 = vpop.f32.mrb[0].mxu0
    %v2215 = vadd.f32 0.0, %v2214
    %v2216 = vpop.f32.mrb[0].mxu0
    %2217 = vmatprep.mubr.f32.mxu0 %v1291
    %2218 = vmatmul.mubr.f32.gmra.mrb[0].mxu0 %v1290
    %v2219 = vpop.f32.mrb[0].mxu0
    %v2220 = vadd.f32 0.0, %v2219
    %v2221 = vpop.f32.mrb[0].mxu0
    %2222 = vdwg.mxu0
    %2223 = vmatprep.subr.mxu0 0.0
    %2224 = vmatpush1.msra.mxu0 %v1404
    %2225 = vmatprep.subr.mxu0 0.0
    %2226 = vmatpush1.msra.mxu0 %v1407
    %2227 = vmatprep.subr.mxu0 0.0
    %2228 = vmatpush1.msra.mxu0 %v1410
    %2229 = vmatprep.subr.mxu0 0.0
    %2230 = vmatpush1.msra.mxu0 %v1413
    %2231 = vmatprep.subr.mxu0 0.0
    %2232 = vmatpush1.msra.mxu0 %v1416
    %2233 = vmatprep.subr.mxu0 0.0
    %2234 = vmatpush1.msra.mxu0 %v1419
    %2235 = vmatprep.subr.mxu0 0.0
    %2236 = vmatpush1.msra.mxu0 %v1422
    %2237 = vmatprep.subr.mxu0 0.0
    %2238 = vmatpush1.msra.mxu0 %v1425
    %2239 = vmatprep.subr.mxu0 0.0
    %2240 = vmatpush1.msra.mxu0 %v1428
    %2241 = vmatprep.subr.mxu0 0.0
    %2242 = vmatpush1.msra.mxu0 %v1431
    %2243 = vmatprep.subr.mxu0 0.0
    %2244 = vmatpush1.msra.mxu0 %v1434
    %2245 = vmatprep.subr.mxu0 0.0
    %2246 = vmatpush1.msra.mxu0 %v1437
    %2247 = vmatprep.subr.mxu0 0.0
    %2248 = vmatpush1.msra.mxu0 %v1440
    %2249 = vmatprep.subr.mxu0 0.0
    %2250 = vmatpush1.msra.mxu0 %v1443
    %2251 = vmatprep.subr.mxu0 0.0
    %2252 = vmatpush1.msra.mxu0 %v1446
    %2253 = vmatprep.subr.mxu0 0.0
    %2254 = vmatpush1.msra.mxu0 %v1449
    %2255 = vmatprep.subr.mxu0 0.0
    %2256 = vmatpush1.msra.mxu0 %v1452
    %2257 = vmatprep.subr.mxu0 0.0
    %2258 = vmatpush1.msra.mxu0 %v1455
    %2259 = vmatprep.subr.mxu0 0.0
    %2260 = vmatpush1.msra.mxu0 %v1458
    %2261 = vmatprep.subr.mxu0 0.0
    %2262 = vmatpush1.msra.mxu0 %v1461
    %2263 = vmatprep.subr.mxu0 0.0
    %2264 = vmatpush1.msra.mxu0 %v1464
    %2265 = vmatprep.subr.mxu0 0.0
    %2266 = vmatpush1.msra.mxu0 %v1467
    %2267 = vmatprep.subr.mxu0 0.0
    %2268 = vmatpush1.msra.mxu0 %v1470
    %2269 = vmatprep.subr.mxu0 0.0
    %2270 = vmatpush1.msra.mxu0 %v1473
    %2271 = vmatprep.subr.mxu0 0.0
    %2272 = vmatpush1.msra.mxu0 %v1476
    %2273 = vmatprep.subr.mxu0 0.0
    %2274 = vmatpush1.msra.mxu0 %v1479
    %2275 = vmatprep.subr.mxu0 0.0
    %2276 = vmatpush1.msra.mxu0 %v1482
    %2277 = vmatprep.subr.mxu0 0.0
    %2278 = vmatpush1.msra.mxu0 %v1485
    %2279 = vmatprep.subr.mxu0 0.0
    %2280 = vmatpush1.msra.mxu0 %v1488
    %2281 = vmatprep.subr.mxu0 0.0
    %2282 = vmatpush1.msra.mxu0 %v1491
    %2283 = vmatprep.subr.mxu0 0.0
    %2284 = vmatpush1.msra.mxu0 %v1494
    %2285 = vmatprep.subr.mxu0 0.0
    %2286 = vmatpush1.msra.mxu0 %v1497
    %2287 = vmatprep.mubr.f32.mxu0 %v1283
    %2288 = vmatmul.mubr.f32.gmra.mrb[0].mxu0 %v1282
    %v2289 = vpop.f32.mrb[0].mxu0
    %v2290 = vadd.f32 %v2215, %v2289
    %v2291 = vpop.f32.mrb[0].mxu0
    %2292 = vmatprep.mubr.f32.mxu0 %v1293
    %2293 = vmatmul.mubr.f32.gmra.mrb[0].mxu0 %v1292
    %v2294 = vpop.f32.mrb[0].mxu0
    %v2295 = vadd.f32 %v2220, %v2294
    %v2296 = vpop.f32.mrb[0].mxu0
    %2297 = vdwg.mxu0
    %2298 = vmatprep.subr.mxu0 0.0
    %2299 = vmatpush1.msra.mxu0 %v1500
    %2300 = vmatprep.subr.mxu0 0.0
    %2301 = vmatpush1.msra.mxu0 %v1503
    %2302 = vmatprep.subr.mxu0 0.0
    %2303 = vmatpush1.msra.mxu0 %v1506
    %2304 = vmatprep.subr.mxu0 0.0
    %2305 = vmatpush1.msra.mxu0 %v1509
    %2306 = vmatprep.subr.mxu0 0.0
    %2307 = vmatpush1.msra.mxu0 %v1512
    %2308 = vmatprep.subr.mxu0 0.0
    %2309 = vmatpush1.msra.mxu0 %v1515
    %2310 = vmatprep.subr.mxu0 0.0
    %2311 = vmatpush1.msra.mxu0 %v1518
    %2312 = vmatprep.subr.mxu0 0.0
    %2313 = vmatpush1.msra.mxu0 %v1521
    %2314 = vmatprep.subr.mxu0 0.0
    %2315 = vmatpush1.msra.mxu0 %v1524
    %2316 = vmatprep.subr.mxu0 0.0
    %2317 = vmatpush1.msra.mxu0 %v1527
    %2318 = vmatprep.subr.mxu0 0.0
    %2319 = vmatpush1.msra.mxu0 %v1530
    %2320 = vmatprep.subr.mxu0 0.0
    %2321 = vmatpush1.msra.mxu0 %v1533
    %2322 = vmatprep.subr.mxu0 0.0
    %2323 = vmatpush1.msra.mxu0 %v1536
    %2324 = vmatprep.subr.mxu0 0.0
    %2325 = vmatpush1.msra.mxu0 %v1539
    %2326 = vmatprep.subr.mxu0 0.0
    %2327 = vmatpush1.msra.mxu0 %v1542
    %2328 = vmatprep.subr.mxu0 0.0
    %2329 = vmatpush1.msra.mxu0 %v1545
    %2330 = vmatprep.subr.mxu0 0.0
    %2331 = vmatpush1.msra.mxu0 %v1548
    %2332 = vmatprep.subr.mxu0 0.0
    %2333 = vmatpush1.msra.mxu0 %v1551
    %2334 = vmatprep.subr.mxu0 0.0
    %2335 = vmatpush1.msra.mxu0 %v1554
    %2336 = vmatprep.subr.mxu0 0.0
    %2337 = vmatpush1.msra.mxu0 %v1557
    %2338 = vmatprep.subr.mxu0 0.0
    %2339 = vmatpush1.msra.mxu0 %v1560
    %2340 = vmatprep.subr.mxu0 0.0
    %2341 = vmatpush1.msra.mxu0 %v1563
    %2342 = vmatprep.subr.mxu0 0.0
    %2343 = vmatpush1.msra.mxu0 %v1566
    %2344 = vmatprep.subr.mxu0 0.0
    %2345 = vmatpush1.msra.mxu0 %v1569
    %2346 = vmatprep.subr.mxu0 0.0
    %2347 = vmatpush1.msra.mxu0 %v1572
    %2348 = vmatprep.subr.mxu0 0.0
    %2349 = vmatpush1.msra.mxu0 %v1575
    %2350 = vmatprep.subr.mxu0 0.0
    %2351 = vmatpush1.msra.mxu0 %v1578
    %2352 = vmatprep.subr.mxu0 0.0
    %2353 = vmatpush1.msra.mxu0 %v1581
    %2354 = vmatprep.subr.mxu0 0.0
    %2355 = vmatpush1.msra.mxu0 %v1584
    %2356 = vmatprep.subr.mxu0 0.0
    %2357 = vmatpush1.msra.mxu0 %v1587
    %2358 = vmatprep.subr.mxu0 0.0
    %2359 = vmatpush1.msra.mxu0 %v1590
    %2360 = vmatprep.subr.mxu0 0.0
    %2361 = vmatpush1.msra.mxu0 %v1593
    %2362 = vmatprep.mubr.f32.mxu0 %v1285
    %2363 = vmatmul.mubr.f32.gmra.mrb[0].mxu0 %v1284
    %v2364 = vpop.f32.mrb[0].mxu0
    %v2365 = vadd.f32 %v2290, %v2364
    %v2366 = vpop.f32.mrb[0].mxu0
    %2367 = vmatprep.mubr.f32.mxu0 %v1295
    %2368 = vmatmul.mubr.f32.gmra.mrb[0].mxu0 %v1294
    %v2369 = vpop.f32.mrb[0].mxu0
    %v2370 = vadd.f32 %v2295, %v2369
    %v2371 = vpop.f32.mrb[0].mxu0
    %2372 = vdwg.mxu0
    %2373 = vmatprep.subr.mxu0 0.0
    %2374 = vmatpush1.msra.mxu0 %v1596
    %2375 = vmatprep.subr.mxu0 0.0
    %2376 = vmatpush1.msra.mxu0 %v1599
    %2377 = vmatprep.subr.mxu0 0.0
    %2378 = vmatpush1.msra.mxu0 %v1602
    %2379 = vmatprep.subr.mxu0 0.0
    %2380 = vmatpush1.msra.mxu0 %v1605
    %2381 = vmatprep.subr.mxu0 0.0
    %2382 = vmatpush1.msra.mxu0 %v1608
    %2383 = vmatprep.subr.mxu0 0.0
    %2384 = vmatpush1.msra.mxu0 %v1611
    %2385 = vmatprep.subr.mxu0 0.0
    %2386 = vmatpush1.msra.mxu0 %v1614
    %2387 = vmatprep.subr.mxu0 0.0
    %2388 = vmatpush1.msra.mxu0 %v1617
    %2389 = vmatprep.subr.mxu0 0.0
    %2390 = vmatpush1.msra.mxu0 %v1620
    %2391 = vmatprep.subr.mxu0 0.0
    %2392 = vmatpush1.msra.mxu0 %v1623
    %2393 = vmatprep.subr.mxu0 0.0
    %2394 = vmatpush1.msra.mxu0 %v1626
    %2395 = vmatprep.subr.mxu0 0.0
    %2396 = vmatpush1.msra.mxu0 %v1629
    %2397 = vmatprep.subr.mxu0 0.0
    %2398 = vmatpush1.msra.mxu0 %v1632
    %2399 = vmatprep.subr.mxu0 0.0
    %2400 = vmatpush1.msra.mxu0 %v1635
    %2401 = vmatprep.subr.mxu0 0.0
    %2402 = vmatpush1.msra.mxu0 %v1638
    %2403 = vmatprep.subr.mxu0 0.0
    %2404 = vmatpush1.msra.mxu0 %v1641
    %2405 = vmatprep.subr.mxu0 0.0
    %2406 = vmatpush1.msra.mxu0 %v1644
    %2407 = vmatprep.subr.mxu0 0.0
    %2408 = vmatpush1.msra.mxu0 %v1647
    %2409 = vmatprep.subr.mxu0 0.0
    %2410 = vmatpush1.msra.mxu0 %v1650
    %2411 = vmatprep.subr.mxu0 0.0
    %2412 = vmatpush1.msra.mxu0 %v1653
    %2413 = vmatprep.subr.mxu0 0.0
    %2414 = vmatpush1.msra.mxu0 %v1656
    %2415 = vmatprep.subr.mxu0 0.0
    %2416 = vmatpush1.msra.mxu0 %v1659
    %2417 = vmatprep.subr.mxu0 0.0
    %2418 = vmatpush1.msra.mxu0 %v1662
    %2419 = vmatprep.subr.mxu0 0.0
    %2420 = vmatpush1.msra.mxu0 %v1665
    %2421 = vmatprep.subr.mxu0 0.0
    %2422 = vmatpush1.msra.mxu0 %v1668
    %2423 = vmatprep.subr.mxu0 0.0
    %2424 = vmatpush1.msra.mxu0 %v1671
    %2425 = vmatprep.subr.mxu0 0.0
    %2426 = vmatpush1.msra.mxu0 %v1674
    %2427 = vmatprep.subr.mxu0 0.0
    %2428 = vmatpush1.msra.mxu0 %v1677
    %2429 = vmatprep.subr.mxu0 0.0
    %2430 = vmatpush1.msra.mxu0 %v1680
    %2431 = vmatprep.subr.mxu0 0.0
    %2432 = vmatpush1.msra.mxu0 %v1683
    %2433 = vmatprep.subr.mxu0 0.0
    %2434 = vmatpush1.msra.mxu0 %v1686
    %2435 = vmatprep.subr.mxu0 0.0
    %2436 = vmatpush1.msra.mxu0 %v1689
    %2437 = vmatprep.mubr.f32.mxu0 %v1287
    %2438 = vmatmul.mubr.f32.gmra.mrb[0].mxu0 %v1286
    %v2439 = vpop.f32.mrb[0].mxu0
    %v2440 = vadd.f32 %v2365, %v2439
    %v2441 = vpop.f32.mrb[0].mxu0
    %2442 = vmatprep.mubr.f32.mxu0 %v1297
    %2443 = vmatmul.mubr.f32.gmra.mrb[0].mxu0 %v1296
    %v2444 = vpop.f32.mrb[0].mxu0
    %v2445 = vadd.f32 %v2370, %v2444
    %v2446 = vpop.f32.mrb[0].mxu0
    %2447 = vdwg.mxu0
    %2448 = vmatprep.subr.mxu0 0.0
    %2449 = vmatpush1.msra.mxu0 %v1692
    %2450 = vmatprep.subr.mxu0 0.0
    %2451 = vmatpush1.msra.mxu0 %v1695
    %2452 = vmatprep.subr.mxu0 0.0
    %2453 = vmatpush1.msra.mxu0 %v1698
    %2454 = vmatprep.subr.mxu0 0.0
    %2455 = vmatpush1.msra.mxu0 %v1701
    %2456 = vmatprep.subr.mxu0 0.0
    %2457 = vmatpush1.msra.mxu0 %v1704
    %2458 = vmatprep.subr.mxu0 0.0
    %2459 = vmatpush1.msra.mxu0 %v1707
    %2460 = vmatprep.subr.mxu0 0.0
    %2461 = vmatpush1.msra.mxu0 %v1710
    %2462 = vmatprep.subr.mxu0 0.0
    %2463 = vmatpush1.msra.mxu0 %v1713
    %2464 = vmatprep.subr.mxu0 0.0
    %2465 = vmatpush1.msra.mxu0 %v1716
    %2466 = vmatprep.subr.mxu0 0.0
    %2467 = vmatpush1.msra.mxu0 %v1719
    %2468 = vmatprep.subr.mxu0 0.0
    %2469 = vmatpush1.msra.mxu0 %v1722
    %2470 = vmatprep.subr.mxu0 0.0
    %2471 = vmatpush1.msra.mxu0 %v1725
    %2472 = vmatprep.subr.mxu0 0.0
    %2473 = vmatpush1.msra.mxu0 %v1728
    %2474 = vmatprep.subr.mxu0 0.0
    %2475 = vmatpush1.msra.mxu0 %v1731
    %2476 = vmatprep.subr.mxu0 0.0
    %2477 = vmatpush1.msra.mxu0 %v1734
    %2478 = vmatprep.subr.mxu0 0.0
    %2479 = vmatpush1.msra.mxu0 %v1737
    %2480 = vmatprep.subr.mxu0 0.0
    %2481 = vmatpush1.msra.mxu0 %v1740
    %2482 = vmatprep.subr.mxu0 0.0
    %2483 = vmatpush1.msra.mxu0 %v1743
    %2484 = vmatprep.subr.mxu0 0.0
    %2485 = vmatpush1.msra.mxu0 %v1746
    %2486 = vmatprep.subr.mxu0 0.0
    %2487 = vmatpush1.msra.mxu0 %v1749
    %2488 = vmatprep.subr.mxu0 0.0
    %2489 = vmatpush1.msra.mxu0 %v1752
    %2490 = vmatprep.subr.mxu0 0.0
    %2491 = vmatpush1.msra.mxu0 %v1755
    %2492 = vmatprep.subr.mxu0 0.0
    %2493 = vmatpush1.msra.mxu0 0.0
    %2494 = vmatprep.subr.mxu0 0.0
    %2495 = vmatpush1.msra.mxu0 0.0
    %2496 = vmatprep.subr.mxu0 0.0
    %2497 = vmatpush1.msra.mxu0 0.0
    %2498 = vmatprep.subr.mxu0 0.0
    %2499 = vmatpush1.msra.mxu0 0.0
    %2500 = vmatprep.subr.mxu0 0.0
    %2501 = vmatpush1.msra.mxu0 0.0
    %2502 = vmatprep.subr.mxu0 0.0
    %2503 = vmatpush1.msra.mxu0 0.0
    %2504 = vmatprep.subr.mxu0 0.0
    %2505 = vmatpush1.msra.mxu0 0.0
    %2506 = vmatprep.subr.mxu0 0.0
    %2507 = vmatpush1.msra.mxu0 0.0
    %2508 = vmatprep.subr.mxu0 0.0
    %2509 = vmatpush1.msra.mxu0 0.0
    %2510 = vmatprep.subr.mxu0 0.0
    %2511 = vmatpush1.msra.mxu0 0.0
    %2512 = vmatprep.mubr.f32.mxu0 %v1758
    %2513 = vmatmul.mubr.f32.gmra.mrb[0].mxu0 %v1288
    %v2514 = vpop.f32.mrb[0].mxu0
    %v2515 = vadd.f32 %v2440, %v2514
    %v2516 = vpop.f32.mrb[0].mxu0
    %2517 = vmatprep.mubr.f32.mxu0 %v1761
    %2518 = vmatmul.mubr.f32.gmra.mrb[0].mxu0 %v1298
    %v2519 = vpop.f32.mrb[0].mxu0
    %v2520 = vadd.f32 %v2445, %v2519
    %v2521 = vpop.f32.mrb[0].mxu0
    %2522 = vdwg.mxu0
    %v2523 = vadd.f32 %v1300, %v2138
    %v2524 = vadd.f32 %v1301, %v2140
    %v2525 = vadd.f32 %v1302, %v2515
    %v2526 = vadd.f32 %v1303, %v2144
    %v2527 = vadd.f32 %v1304, %v2146
    %v2528 = vadd.f32 %v1305, %v2520
    %2529 = vst [vmem:[#allocation2] sm:$0xff] %v2523
    %2530 = vst [vmem:[#allocation2 + $0x8] sm:$0xff] %v2524
    %2531 = vst.msk [vmem:[#allocation2 + $0x10] sm:$0xff] %vm472, %v2525
    %2532 = vst [vmem:[#allocation2 + $0x18] sm:$0xff] %v2526
    %2533 = vst [vmem:[#allocation2 + $0x20] sm:$0xff] %v2527
    %2534 = vst.msk [vmem:[#allocation2 + $0x28] sm:$0xff] %vm472, %v2528
    // Predicated region
    $region26: #{tpu_custom_call.1} parent=1 // pred_check
      %p2535 = pneg %p21
    $region27: #{tpu_custom_call.1} parent=1 // pred_check_branch
      %2537 = sbr.rel (%p2535) target = $region29
    $region28: #{tpu_custom_call.1} parent=1 // pred_region
      %v2538 = vld [vmem:[#allocation2] sm:$0xff]
      %v2539 = vld [vmem:[#allocation2 + $0x8] sm:$0xff]
      %v2540 = vld [vmem:[#allocation2 + $0x10] sm:$0xff]
      %v2541 = vld [vmem:[#allocation2 + $0x18] sm:$0xff]
      %v2542 = vld [vmem:[#allocation2 + $0x20] sm:$0xff]
      %v2543 = vld [vmem:[#allocation2 + $0x28] sm:$0xff]
      %v2544 = vld [vmem:[%s4] sm:$0x7]
      %v2546 = vlaneseq
      %v2547 = vshrl.u32 %v2546, 7
      %v2548 = vsub.s32 0, %v2547
      %v2549 = vrot.slane %v2544, %v2548
      %v2550 = vlaneseq
      %v2551 = vshrl.u32 %v2550, 7
      %v2552 = vsub.s32 1, %v2551
      %v2553 = vrot.slane %v2544, %v2552
      %v2554 = vlaneseq
      %v2555 = vshrl.u32 %v2554, 7
      %v2556 = vsub.s32 2, %v2555
      %v2557 = vrot.slane %v2544, %v2556
      %v2561 = vadd.f32 %v2538, %v2549
      %v2562 = vadd.f32 %v2539, %v2553
      %v2563 = vadd.f32 %v2540, %v2557
      %v2564 = vadd.f32 %v2541, %v2549
      %v2565 = vadd.f32 %v2542, %v2553
      %v2566 = vadd.f32 %v2543, %v2557
      %2567 = vst [vmem:[#allocation3] sm:$0xff] %v2561
      %2568 = vst [vmem:[#allocation3 + $0x8] sm:$0xff] %v2562
      %2569 = vst.msk [vmem:[#allocation3 + $0x10] sm:$0xff] %vm472, %v2563
      %2570 = vst [vmem:[#allocation3 + $0x18] sm:$0xff] %v2564
      %2571 = vst [vmem:[#allocation3 + $0x20] sm:$0xff] %v2565
      %2572 = vst.msk [vmem:[#allocation3 + $0x28] sm:$0xff] %vm472, %v2566
    $region29: #{tpu_custom_call.1} parent=1 // pred_fallthru
      _
    // Predicated region
    $region30: #{tpu_custom_call.1} parent=1 // pred_check
      _
    $region31: #{tpu_custom_call.1} parent=1 // pred_check_branch
      %2574 = sbr.rel (0) target = $region33
    $region32: #{tpu_custom_call.1} parent=1 // pred_region
      %s2576 = ssub.s32 768, 768
      %2577 = vsyncadd [#allocation4], %s2576
      %s2578 = sshll.u32 [#allocation3], 4
      %s2579 = int_to_ptr.vmem [resolvable:$true] %s2578
      %2584 = dma.vmem_to_hbm [thread:$0]  %s2579, 768, %s5, [#allocation4], 384, 384, 24
    $region33: #{tpu_custom_call.1} parent=1 // pred_fallthru
      _
    // Predicated region
    $region34: #{tpu_custom_call.1} parent=1 // pred_check
      _
    $region35: #{tpu_custom_call.1} parent=1 // pred_check_branch
      %2586 = sbr.rel (0) target = $region37
    $region36: #{tpu_custom_call.1} parent=1 // pred_region
      %2587 = dma.done [#allocation4], 768
    $region37: #{tpu_custom_call.1} parent=1 // pred_fallthru
      _
    %2588 = vsyncpa [#allocation4], 1

</llo_original>
